<compile_context>
chip_gen: v6e
topology: v6e:2x2x1
jax: 0.10.0
libtpu: 0.0.40
codegen_flags: <defaults>
</compile_context>

<pallas_src>
import math

import numpy as np
import jax
import jax.numpy as jnp
from jax.experimental import pallas as pl
from jax.experimental.pallas import tpu as pltpu


# ---------------------------------------------------------------------------
# Kernels
# ---------------------------------------------------------------------------

def _make_paired_kernel(hw):
    """Paired sin/cos kernel (used only when hw % 128 == 0).

    Output block is (1, p_tile, 2*hw); lanes [0, hw) of pair-row p hold output
    channel 2p (sin) and lanes [hw, 2*hw) hold channel 2p+1 (cos).  Since the
    (B, C//2, 2*hw) array is row-major, this is bit-identical to NCHW.
    Both slice stores are 128-lane aligned -> unmasked dense vst.
    """
    def kernel(coef_y_ref, coef_x_ref, y_ref, x_ref, pos_ref):
        # coef_*_ref : (p_tile, 1) f32   per-pair 1/dim_t (exactly one nonzero)
        # y_ref/x_ref: (1, 1, hw)  f32   flattened y/x embeddings, one batch
        # pos_ref    : (1, p_tile, 2*hw) f32
        arg = coef_y_ref[...] * y_ref[0] + coef_x_ref[...] * x_ref[0]  # (p_tile, hw)
        pos_ref[0, :, :hw] = jnp.sin(arg)   # even channels 2p
        pos_ref[0, :, hw:] = jnp.cos(arg)   # odd channels 2p + 1
    return kernel


def _phase_kernel(coef_y_ref, coef_x_ref, phase_ref, y_ref, x_ref, pos_ref):
    """Per-channel fallback (hw not a multiple of 128): one full dense store.

    cos is folded into sin via a +pi/2 phase on odd channels.  The extra f32
    rounding of (arg + pi/2) only matters for very large unnormalized
    arguments; the feature-map sizes that land on this path keep the deviation
    orders of magnitude below 1e-4.
    """
    # coef_* / phase : (c_tile, 1) f32 ; y/x : (1, 1, hw) ; pos : (1, c_tile, hw)
    arg = (coef_y_ref[...] * y_ref[0]
           + coef_x_ref[...] * x_ref[0]
           + phase_ref[...])
    pos_ref[0] = jnp.sin(arg)


# ---------------------------------------------------------------------------
# Trace-time (numpy) channel tables
# ---------------------------------------------------------------------------

def _pair_tables(num_pos_feats, temperature):
    """(C//2, 1) per-pair 1/dim_t tables for the paired kernel."""
    npf = num_pos_feats
    k = np.arange(npf // 2, dtype=np.float64)
    inv_pair = np.power(float(temperature), -2.0 * k / float(npf)).astype(np.float32)
    zeros = np.zeros_like(inv_pair)
    coef_y = np.concatenate([inv_pair, zeros])    # pairs [0, npf/2): y channels
    coef_x = np.concatenate([zeros, inv_pair])    # pairs [npf/2, npf): x channels
    P = npf
    return coef_y.reshape(P, 1), coef_x.reshape(P, 1)


def _phase_tables(num_pos_feats, temperature):
    """(C, 1) per-channel 1/dim_t + phase tables for the fallback kernel."""
    npf = num_pos_feats
    i = np.arange(npf, dtype=np.float64)
    inv_dim_t = np.power(float(temperature),
                         -2.0 * np.floor(i / 2.0) / float(npf)).astype(np.float32)
    phase_half = (i % 2).astype(np.float32) * np.float32(np.pi / 2.0)
    zeros = np.zeros((npf,), np.float32)
    coef_y = np.concatenate([inv_dim_t, zeros])
    coef_x = np.concatenate([zeros, inv_dim_t])
    phase = np.concatenate([phase_half, phase_half])
    C = 2 * npf
    return coef_y.reshape(C, 1), coef_x.reshape(C, 1), phase.reshape(C, 1)


# ---------------------------------------------------------------------------
# Tiling
# ---------------------------------------------------------------------------

def _choose_row_tile(n_rows, lane_width, budget_bytes=24 * 1024 * 1024):
    """Largest legal divisor of n_rows whose double-buffered working set fits.

    Legality: the (tile, 1) table blocks put `tile` on the sublane axis, so it
    must be a multiple of 8 or the full extent.  The footprint explicitly
    includes the 2x pipelining buffers so the result stays inside v7x's 64 MiB
    physical VMEM (and the 32 MiB scoped default everywhere).
    """
    lane_pad = -(-lane_width // 128) * 128

    def footprint(t):
        t_pad = -(-t // 8) * 8
        out_b = 2 * t_pad * lane_pad * 4            # double-buffered output block
        tab_b = 2 * 3 * t_pad * 128 * 4             # up to three (t, 1) tables
        emb_b = 2 * 2 * 8 * lane_pad * 4            # y / x embedding blocks
        return out_b + tab_b + emb_b

    valid = [t for t in range(1, n_rows + 1)
             if n_rows % t == 0 and (t % 8 == 0 or t == n_rows)]
    fitting = [t for t in valid if footprint(t) <= budget_bytes]
    return max(fitting) if fitting else min(valid)


# ---------------------------------------------------------------------------
# Public wrapper
# ---------------------------------------------------------------------------

def position_embedding_sine(mask, num_pos_feats=64, temperature=10000,
                            normalize=False, scale=None, tile_rows=None):
    """mask: (B, H, W) bool/int (True/1 = padded).

    Returns (B, 2*num_pos_feats, H, W) float32, matching the PyTorch module.
    `tile_rows` optionally overrides the channel(-pair) tile size.
    """
    if scale is not None and normalize is False:
        raise ValueError('normalize should be True if scale is passed')
    if scale is None:
        scale = 2 * math.pi
    if num_pos_feats % 2 != 0:
        raise ValueError('num_pos_feats must be even (required by the original '
                         'sin/cos channel stacking)')

    B, H, W = mask.shape
    HW = H * W
    C = 2 * num_pos_feats

    # ---- hoisted prologue: cumsum + normalize on the tiny (B, H, W) mask ----
    not_mask = 1.0 - mask.astype(jnp.float32)
    y_embed = jnp.cumsum(not_mask, axis=1)
    x_embed = jnp.cumsum(not_mask, axis=2)
    if normalize:
        eps = 1e-06
        y_embed = (y_embed - 0.5) / (y_embed[:, -1:, :] + eps) * scale
        x_embed = (x_embed - 0.5) / (x_embed[:, :, -1:] + eps) * scale
    y_flat = y_embed.reshape(B, 1, HW)
    x_flat = x_embed.reshape(B, 1, HW)

    def emb_spec():
        return pl.BlockSpec((1, 1, HW), lambda b, t: (b, 0, 0))

    cparams = pltpu.CompilerParams(
        dimension_semantics=("parallel", "parallel"),
        vmem_limit_bytes=32 * 1024 * 1024)

    if HW % 128 == 0:
        # Paired path: exact sin/cos, one argument per (sin, cos) channel pair.
        P = C // 2
        p_tile = tile_rows if tile_rows is not None else _choose_row_tile(P, 2 * HW)
        assert P % p_tile == 0 and (p_tile % 8 == 0 or p_tile == P)
        coef_y, coef_x = _pair_tables(num_pos_feats, temperature)
        tab_spec = pl.BlockSpec((p_tile, 1), lambda b, t: (t, 0))
        cost = pl.CostEstimate(
            flops=3 * B * P * HW,
            transcendentals=B * C * HW,
            bytes_accessed=B * C * HW * 4 + 2 * B * HW * 4 + 2 * P * 4)
        out = pl.pallas_call(
            _make_paired_kernel(HW),
            out_shape=jax.ShapeDtypeStruct((B, P, 2 * HW), jnp.float32),
            grid_spec=pltpu.PrefetchScalarGridSpec(
                num_scalar_prefetch=0,
                grid=(B, P // p_tile),
                in_specs=[tab_spec, tab_spec, emb_spec(), emb_spec()],
                out_specs=pl.BlockSpec((1, p_tile, 2 * HW),
                                       lambda b, t: (b, t, 0)),
            ),
            compiler_params=cparams,
            cost_estimate=cost,
        )(jnp.asarray(coef_y), jnp.asarray(coef_x), y_flat, x_flat)
    else:
        # Fallback: per-channel phase-folded sin, one full dense store.
        c_tile = tile_rows if tile_rows is not None else _choose_row_tile(C, HW)
        assert C % c_tile == 0 and (c_tile % 8 == 0 or c_tile == C)
        coef_y, coef_x, phase = _phase_tables(num_pos_feats, temperature)
        tab_spec = pl.BlockSpec((c_tile, 1), lambda b, t: (t, 0))
        cost = pl.CostEstimate(
            flops=5 * B * C * HW,
            transcendentals=B * C * HW,
            bytes_accessed=B * C * HW * 4 + 2 * B * HW * 4 + 3 * C * 4)
        out = pl.pallas_call(
            _phase_kernel,
            out_shape=jax.ShapeDtypeStruct((B, C, HW), jnp.float32),
            grid_spec=pltpu.PrefetchScalarGridSpec(
                num_scalar_prefetch=0,
                grid=(B, C // c_tile),
                in_specs=[tab_spec, tab_spec, tab_spec, emb_spec(), emb_spec()],
                out_specs=pl.BlockSpec((1, c_tile, HW),
                                       lambda b, t: (b, t, 0)),
            ),
            compiler_params=cparams,
            cost_estimate=cost,
        )(jnp.asarray(coef_y), jnp.asarray(coef_x), jnp.asarray(phase),
          y_flat, x_flat)

    # Free reshape: both kernel layouts are bit-identical to row-major NCHW.
    return out.reshape(B, C, H, W)


# ---------------------------------------------------------------------------
# Pure-JAX reference mirroring the PyTorch forward (for correctness checks)
# ---------------------------------------------------------------------------

def _reference(mask, num_pos_feats=64, temperature=10000, normalize=False, scale=None):
    if scale is None:
        scale = 2 * math.pi
    not_mask = (~mask).astype(jnp.float32)
    y_embed = jnp.cumsum(not_mask, axis=1)
    x_embed = jnp.cumsum(not_mask, axis=2)
    if normalize:
        eps = 1e-06
        y_embed = (y_embed - 0.5) / (y_embed[:, -1:, :] + eps) * scale
        x_embed = (x_embed - 0.5) / (x_embed[:, :, -1:] + eps) * scale
    dim_t = jnp.arange(num_pos_feats, dtype=jnp.float32)
    dim_t = temperature ** (2 * (dim_t // 2) / num_pos_feats)
    pos_x = x_embed[:, :, :, None] / dim_t
    pos_y = y_embed[:, :, :, None] / dim_t
    pos_x = jnp.stack((jnp.sin(pos_x[..., 0::2]), jnp.cos(pos_x[..., 1::2])),
                      axis=4).reshape(*pos_x.shape[:3], -1)
    pos_y = jnp.stack((jnp.sin(pos_y[..., 0::2]), jnp.cos(pos_y[..., 1::2])),
                      axis=4).reshape(*pos_y.shape[:3], -1)
    pos = jnp.concatenate((pos_y, pos_x), axis=3)
    return jnp.transpose(pos, (0, 3, 1, 2))


if __name__ == "__main__":
    key = jax.random.PRNGKey(0)

    # Case 1: paired path (H*W % 128 == 0), normalize=False.
    B, H, W, npf = 2, 16, 16, 32          # -> 64 output channels, H*W = 256
    mask = jax.random.bernoulli(key, p=0.3, shape=(B, H, W))   # True = padded
    out = jax.block_until_ready(position_embedding_sine(mask, num_pos_feats=npf))
    ref = _reference(mask, num_pos_feats=npf)
    assert out.shape == (B, 2 * npf, H, W)
    assert jnp.allclose(out, ref, atol=1e-4, rtol=1e-4)

    # Case 2: paired path, normalize=True (DETR config), forced pair tiling so
    # the multi-step channel grid / table blocking is exercised.
    out_n = jax.block_until_ready(
        position_embedding_sine(mask, num_pos_feats=npf, normalize=True,
                                tile_rows=8))
    ref_n = _reference(mask, num_pos_feats=npf, normalize=True)
    assert jnp.allclose(out_n, ref_n, atol=1e-4, rtol=1e-4)

    # Case 3: fallback path (H*W = 240, not a multiple of 128), forced tiling.
    B2, H2, W2, npf2 = 1, 12, 20, 16      # -> 32 output channels
    mask2 = jax.random.bernoulli(jax.random.PRNGKey(0), p=0.25,
                                 shape=(B2, H2, W2))
    out2 = jax.block_until_ready(
        position_embedding_sine(mask2, num_pos_feats=npf2, normalize=True,
                                tile_rows=8))
    ref2 = _reference(mask2, num_pos_feats=npf2, normalize=True)
    assert out2.shape == (B2, 2 * npf2, H2, W2)
    assert jnp.allclose(out2, ref2, atol=1e-4, rtol=1e-4)

    print("KERNEL_OK")
</pallas_src>

<mosaic_0001>
module attributes {stable_mosaic.version = 11 : i64} {
  func.func @kernel(%arg0: i32, %arg1: i32, %arg2: memref<32x1xf32, #tpu.memory_space<vmem>>, %arg3: memref<32x1xf32, #tpu.memory_space<vmem>>, %arg4: memref<1x1x256xf32, #tpu.memory_space<vmem>>, %arg5: memref<1x1x256xf32, #tpu.memory_space<vmem>>, %arg6: memref<1x32x512xf32, #tpu.memory_space<vmem>>) attributes {dimension_semantics = [#tpu.dimension_semantics<parallel>, #tpu.dimension_semantics<parallel>], iteration_bounds = array<i64: 2, 1>, scalar_prefetch = 0 : i64, scratch_operands = 0 : i64, tpu.core_type = #tpu.core_type<tc>, window_params = [{transform_indices = @transform_0, window_bounds = array<i64: 32, 1>}, {transform_indices = @transform_1, window_bounds = array<i64: 32, 1>}, {transform_indices = @transform_2, window_bounds = array<i64: 1, 1, 256>}, {transform_indices = @transform_3, window_bounds = array<i64: 1, 1, 256>}, {transform_indices = @transform_4, window_bounds = array<i64: 1, 32, 512>}]} {
    %c0 = arith.constant 0 : index
    %c0_0 = arith.constant 0 : index
    %0 = vector.load %arg2[%c0, %c0_0] : memref<32x1xf32, #tpu.memory_space<vmem>>, vector<32x1xf32>
    %c0_1 = arith.constant 0 : index
    %c0_2 = arith.constant 0 : index
    %c0_3 = arith.constant 0 : index
    %1 = vector.load %arg4[%c0_1, %c0_2, %c0_3] : memref<1x1x256xf32, #tpu.memory_space<vmem>>, vector<1x1x256xf32>
    %2 = vector.shape_cast %1 : vector<1x1x256xf32> to vector<1x256xf32>
    %3 = vector.broadcast %0 : vector<32x1xf32> to vector<32x256xf32>
    %4 = vector.broadcast %2 : vector<1x256xf32> to vector<32x256xf32>
    %5 = arith.mulf %3, %4 : vector<32x256xf32>
    %c0_4 = arith.constant 0 : index
    %c0_5 = arith.constant 0 : index
    %6 = vector.load %arg3[%c0_4, %c0_5] : memref<32x1xf32, #tpu.memory_space<vmem>>, vector<32x1xf32>
    %c0_6 = arith.constant 0 : index
    %c0_7 = arith.constant 0 : index
    %c0_8 = arith.constant 0 : index
    %7 = vector.load %arg5[%c0_6, %c0_7, %c0_8] : memref<1x1x256xf32, #tpu.memory_space<vmem>>, vector<1x1x256xf32>
    %8 = vector.shape_cast %7 : vector<1x1x256xf32> to vector<1x256xf32>
    %9 = vector.broadcast %6 : vector<32x1xf32> to vector<32x256xf32>
    %10 = vector.broadcast %8 : vector<1x256xf32> to vector<32x256xf32>
    %11 = arith.mulf %9, %10 : vector<32x256xf32>
    %12 = arith.addf %5, %11 : vector<32x256xf32>
    %13 = math.sin %12 : vector<32x256xf32>
    %c0_9 = arith.constant 0 : index
    %c0_10 = arith.constant 0 : index
    %c0_11 = arith.constant 0 : index
    %14 = vector.load %arg6[%c0_9, %c0_10, %c0_11] : memref<1x32x512xf32, #tpu.memory_space<vmem>>, vector<1x32x256xf32>
    %15 = vector.shape_cast %14 : vector<1x32x256xf32> to vector<32x256xf32>
    %16 = vector.shape_cast %13 : vector<32x256xf32> to vector<1x32x256xf32>
    tpu.vector_store %arg6[%c0_9, %c0_10, %c0_11], %16 {strides = array<i32>} : memref<1x32x512xf32, #tpu.memory_space<vmem>>, vector<1x32x256xf32>,
    %17 = math.cos %12 : vector<32x256xf32>
    %c0_12 = arith.constant 0 : index
    %c0_13 = arith.constant 0 : index
    %c256 = arith.constant 256 : index
    %18 = vector.load %arg6[%c0_12, %c0_13, %c256] : memref<1x32x512xf32, #tpu.memory_space<vmem>>, vector<1x32x256xf32>
    %19 = vector.shape_cast %18 : vector<1x32x256xf32> to vector<32x256xf32>
    %20 = vector.shape_cast %17 : vector<32x256xf32> to vector<1x32x256xf32>
    tpu.vector_store %arg6[%c0_12, %c0_13, %c256], %20 {strides = array<i32>} : memref<1x32x512xf32, #tpu.memory_space<vmem>>, vector<1x32x256xf32>,
    return
  }
  func.func @transform_0(%arg0: i32, %arg1: i32) -> (i32, i32) {
    %c0_i32 = arith.constant 0 : i32
    %c0_i32_0 = arith.constant 0 : i32
    return %arg1, %c0_i32 : i32, i32
  }
  func.func @transform_1(%arg0: i32, %arg1: i32) -> (i32, i32) {
    %c0_i32 = arith.constant 0 : i32
    %c0_i32_0 = arith.constant 0 : i32
    return %arg1, %c0_i32 : i32, i32
  }
  func.func @transform_2(%arg0: i32, %arg1: i32) -> (i32, i32, i32) {
    %c0_i32 = arith.constant 0 : i32
    %c0_i32_0 = arith.constant 0 : i32
    %c0_i32_1 = arith.constant 0 : i32
    return %arg0, %c0_i32, %c0_i32_0 : i32, i32, i32
  }
  func.func @transform_3(%arg0: i32, %arg1: i32) -> (i32, i32, i32) {
    %c0_i32 = arith.constant 0 : i32
    %c0_i32_0 = arith.constant 0 : i32
    %c0_i32_1 = arith.constant 0 : i32
    return %arg0, %c0_i32, %c0_i32_0 : i32, i32, i32
  }
  func.func @transform_4(%arg0: i32, %arg1: i32) -> (i32, i32, i32) {
    %c0_i32 = arith.constant 0 : i32
    %c0_i32_0 = arith.constant 0 : i32
    return %arg0, %arg1, %c0_i32 : i32, i32, i32
  }
}

</mosaic_0001>

<llo_original>
// kernel: tpu_custom_call.1
$region0: #{tpu_custom_call.1}
  #allocation0 [shape = 'u32[]', space=smem, size = 0x4, offset = 0x4, fixed_abs, tag = 'smem constant byte address 0x4 - core index']
  #allocation1 [shape = 'u32[144,128]{1,0:T(1,128)}', space=vmem, size = 0x12000, scoped, tag = 'internal scratch']
  %s0 = inlined_call_operand.vmem [shape: f32[32,1], index: 0, kind: input, shape index: {}]
  %s1 = inlined_call_operand.vmem [shape: f32[32,1], index: 1, kind: input, shape index: {}]
  %s2 = inlined_call_operand.vmem [shape: f32[2,1,256], index: 2, kind: input, shape index: {}]
  %s3 = inlined_call_operand.vmem [shape: f32[2,1,256], index: 3, kind: input, shape index: {}]
  %s4 = inlined_call_operand.hbm [shape: f32[2,32,512], index: 4, kind: output, shape index: {}]
  %s5 = sld [smem:[#allocation0]]
  $region49: #{tpu_custom_call.1} parent=0
    _
  %s7 = ssub.s32 1, %s5
  %s8 = scalar_select 0, %s7, %s5
  $region1: #{tpu_custom_call.1} parent=0
    #allocation2 [shape = 'u8[131072]{0}', space=vmem, size = 0x20000, scoped, tag = 'output window, operand 0']
    #allocation3 [shape = 's32[2]{0}', space=sflag, size = 0x8, scoped, tag = 'scoped memory for tpu_custom_call.1']
    %9 = vsyncpa [#allocation3], 0
    %s10 = scalar_lea.sflag [#allocation3], 1
    %11 = vsyncpa %s10, 0
    loop: start=0, step=1, limit=4
    $region2: #{tpu_custom_call.1} parent=1 // loop_pre_header
      _
    $region3: #{tpu_custom_call.1} parent=1 // loop_header
      %s13 = sphi 0, %s17
      %p14 = scmp.ge.s32.totalorder %s13, 4
      %s20 = sphi 0, %s32
      %s21 = sphi 0, %s28
      %s22 = sphi 0, %s20
      %s23 = sphi 0, %s21
      %s24 = sphi 0, %s22
      %s25 = sphi 0, %s23
      %s35 = sphi 0, %s37
      %s38 = sphi 0, %s35
      %s39 = sphi 0, %s38
      %s55 = sphi 0, %s39
      %s61 = sphi 0, %s63
      %s64 = sphi 0, %s61
      %s65 = sphi 0, %s64
      %s81 = sphi 0, %s65
      %s87 = sphi 0, %s89
      %s90 = sphi 0, %s87
      %s91 = sphi 0, %s90
      %s107 = sphi 0, %s91
      %s113 = sphi 0, %s115
      %s116 = sphi 0, %s113
      %s117 = sphi 0, %s116
      %s133 = sphi 0, %s117
      %s141 = sphi 0, %s143
      %s144 = sphi 0, %s141
      %s145 = sphi 0, %s144
      %s161 = sphi 0, %s145
    $region4: #{tpu_custom_call.1} parent=1 // loop_header_branch
      %16 = sbr.rel (%p14) target = $region8
    $region5: #{tpu_custom_call.1} parent=1 // loop_body
      %s18 = ssub.s32 %s13, 1
      %s19 = ssub.s32 %s13, 2
      %s26 = sadd.s32 1, %s21
      %p27 = scmp.ge.s32.totalorder %s26, 1
      %s28 = scalar_select %p27, 0, %s26
      %s29 = sadd.s32 1, %s20
      %s30 = scalar_select %p27, %s29, %s20
      %p31 = scmp.ge.s32.totalorder %s30, 2
      %s32 = scalar_select %p31, 0, %s30
      %s33 = ssub.s32 %s21, %s28
      %p34 = scmp.eq.s32.totalorder %s33, 0
      %s36 = sadd.s32 %s35, 1
      %s37 = scalar_select %p34, %s35, %s36
      %p40 = pneg %p34
      %p41 = scmp.eq.s32.totalorder %s13, 1
      %p42 = por %p40, %p41
      %p43 = scmp.ne.s32.totalorder %s35, %s38
      %p44 = scmp.eq.s32.totalorder %s13, 0
      %p45 = por %p43, %p44
      %p46 = scmp.ne.s32.totalorder %s35, %s38
      %p47 = scmp.eq.s32.totalorder %s18, 1
      %p48 = por %p46, %p47
      %p49 = scmp.ne.s32.totalorder %s38, %s39
      %p50 = scmp.eq.s32.totalorder %s18, 0
      %p51 = por %p49, %p50
      %p52 = scmp.ne.s32.totalorder %s38, %s39
      %p53 = scmp.eq.s32.totalorder %s19, 1
      %p54 = por %p52, %p53
      %p56 = scmp.ne.s32.totalorder %s39, %s55
      %p57 = scmp.eq.s32.totalorder %s19, 0
      %p58 = por %p56, %p57
      %s59 = ssub.s32 %s21, %s28
      %p60 = scmp.eq.s32.totalorder %s59, 0
      %s62 = sadd.s32 %s61, 1
      %s63 = scalar_select %p60, %s61, %s62
      %p66 = pneg %p60
      %p67 = scmp.eq.s32.totalorder %s13, 1
      %p68 = por %p66, %p67
      %p69 = scmp.ne.s32.totalorder %s61, %s64
      %p70 = scmp.eq.s32.totalorder %s13, 0
      %p71 = por %p69, %p70
      %p72 = scmp.ne.s32.totalorder %s61, %s64
      %p73 = scmp.eq.s32.totalorder %s18, 1
      %p74 = por %p72, %p73
      %p75 = scmp.ne.s32.totalorder %s64, %s65
      %p76 = scmp.eq.s32.totalorder %s18, 0
      %p77 = por %p75, %p76
      %p78 = scmp.ne.s32.totalorder %s64, %s65
      %p79 = scmp.eq.s32.totalorder %s19, 1
      %p80 = por %p78, %p79
      %p82 = scmp.ne.s32.totalorder %s65, %s81
      %p83 = scmp.eq.s32.totalorder %s19, 0
      %p84 = por %p82, %p83
      %s85 = ssub.s32 %s20, %s32
      %p86 = scmp.eq.s32.totalorder %s85, 0
      %s88 = sadd.s32 %s87, 1
      %s89 = scalar_select %p86, %s87, %s88
      %p92 = pneg %p86
      %p93 = scmp.eq.s32.totalorder %s13, 1
      %p94 = por %p92, %p93
      %p95 = scmp.ne.s32.totalorder %s87, %s90
      %p96 = scmp.eq.s32.totalorder %s13, 0
      %p97 = por %p95, %p96
      %p98 = scmp.ne.s32.totalorder %s87, %s90
      %p99 = scmp.eq.s32.totalorder %s18, 1
      %p100 = por %p98, %p99
      %p101 = scmp.ne.s32.totalorder %s90, %s91
      %p102 = scmp.eq.s32.totalorder %s18, 0
      %p103 = por %p101, %p102
      %p104 = scmp.ne.s32.totalorder %s90, %s91
      %p105 = scmp.eq.s32.totalorder %s19, 1
      %p106 = por %p104, %p105
      %p108 = scmp.ne.s32.totalorder %s91, %s107
      %p109 = scmp.eq.s32.totalorder %s19, 0
      %p110 = por %p108, %p109
      %s111 = ssub.s32 %s20, %s32
      %p112 = scmp.eq.s32.totalorder %s111, 0
      %s114 = sadd.s32 %s113, 1
      %s115 = scalar_select %p112, %s113, %s114
      %p118 = pneg %p112
      %p119 = scmp.eq.s32.totalorder %s13, 1
      %p120 = por %p118, %p119
      %p121 = scmp.ne.s32.totalorder %s113, %s116
      %p122 = scmp.eq.s32.totalorder %s13, 0
      %p123 = por %p121, %p122
      %p124 = scmp.ne.s32.totalorder %s113, %s116
      %p125 = scmp.eq.s32.totalorder %s18, 1
      %p126 = por %p124, %p125
      %p127 = scmp.ne.s32.totalorder %s116, %s117
      %p128 = scmp.eq.s32.totalorder %s18, 0
      %p129 = por %p127, %p128
      %p130 = scmp.ne.s32.totalorder %s116, %s117
      %p131 = scmp.eq.s32.totalorder %s19, 1
      %p132 = por %p130, %p131
      %p134 = scmp.ne.s32.totalorder %s117, %s133
      %p135 = scmp.eq.s32.totalorder %s19, 0
      %p136 = por %p134, %p135
      %s137 = ssub.s32 %s20, %s32
      %s138 = ssub.s32 %s21, %s28
      %s139 = sor.u32 %s137, %s138
      %p140 = scmp.eq.s32.totalorder %s139, 0
      %s142 = sadd.s32 %s141, 1
      %s143 = scalar_select %p140, %s141, %s142
      %p146 = pneg %p140
      %p147 = scmp.eq.s32.totalorder %s13, 1
      %p148 = por %p146, %p147
      %p149 = scmp.ne.s32.totalorder %s141, %s144
      %p150 = scmp.eq.s32.totalorder %s13, 0
      %p151 = por %p149, %p150
      %p152 = scmp.ne.s32.totalorder %s141, %s144
      %p153 = scmp.eq.s32.totalorder %s18, 1
      %p154 = por %p152, %p153
      %p155 = scmp.ne.s32.totalorder %s144, %s145
      %p156 = scmp.eq.s32.totalorder %s18, 0
      %p157 = por %p155, %p156
      %p158 = scmp.ne.s32.totalorder %s144, %s145
      %p159 = scmp.eq.s32.totalorder %s19, 1
      %p160 = por %p158, %p159
      %p162 = scmp.ne.s32.totalorder %s145, %s161
      %p163 = scmp.eq.s32.totalorder %s19, 0
      %p164 = por %p162, %p163
      %p165 = scmp.le.s32.totalorder 1, %s13
      %p166 = scmp.lt.s32.totalorder %s13, 3
      %p167 = pnand %p165, %p166
      %p168 = pneg %p167
      // Predicated region
      $region9: #{tpu_custom_call.1} parent=5 // pred_check
        _
      $region10: #{tpu_custom_call.1} parent=5 // pred_check_branch
        %170 = sbr.rel (%p167) target = $region12
      $region11: #{tpu_custom_call.1} parent=5 // pred_region
        %s171 = ssub.s32 %s13, 1
        // Predicated region
        $region13: #{tpu_custom_call.1} parent=11 // pred_check
          %p172 = pneg %p51
        $region14: #{tpu_custom_call.1} parent=11 // pred_check_branch
          %174 = sbr.rel (%p172) target = $region16
        $region15: #{tpu_custom_call.1} parent=11 // pred_region
          %s175 = smul.u32 4, %s23
          %p176 = scmp.lt.s32.totalorder %s175, 3
          %s177 = scalar_select %p176, %s175, 3
          %s178 = smul.addr %s177, 8
          %s179 = scalar_lea.vmem %s0, %s178
          %s180 = smul.u32 4, %s23
        $region16: #{tpu_custom_call.1} parent=11 // pred_fallthru
          _
        // Predicated region
        $region17: #{tpu_custom_call.1} parent=11 // pred_check
          %p181 = pneg %p77
        $region18: #{tpu_custom_call.1} parent=11 // pred_check_branch
          %183 = sbr.rel (%p181) target = $region20
        $region19: #{tpu_custom_call.1} parent=11 // pred_region
          %s184 = smul.u32 4, %s23
          %p185 = scmp.lt.s32.totalorder %s184, 3
          %s186 = scalar_select %p185, %s184, 3
          %s187 = smul.addr %s186, 8
          %s188 = scalar_lea.vmem %s1, %s187
          %s189 = smul.u32 4, %s23
        $region20: #{tpu_custom_call.1} parent=11 // pred_fallthru
          _
      $region12: #{tpu_custom_call.1} parent=5 // pred_fallthru
        _
      %p190 = scmp.lt.s32.totalorder %s13, 2
      // Predicated region
      $region21: #{tpu_custom_call.1} parent=5 // pred_check
        %p191 = pneg %p190
      $region22: #{tpu_custom_call.1} parent=5 // pred_check_branch
        %193 = sbr.rel (%p191) target = $region24
      $region23: #{tpu_custom_call.1} parent=5 // pred_region
        // Predicated region
        $region25: #{tpu_custom_call.1} parent=23 // pred_check
          %p194 = pneg %p97
        $region26: #{tpu_custom_call.1} parent=23 // pred_check_branch
          %196 = sbr.rel (%p194) target = $region28
        $region27: #{tpu_custom_call.1} parent=23 // pred_region
          %p197 = scmp.lt.s32.totalorder %s20, 1
          %s198 = scalar_select %p197, %s20, 1
          %s199 = smul.addr %s198, 2
          %s200 = scalar_lea.vmem %s2, %s199
        $region28: #{tpu_custom_call.1} parent=23 // pred_fallthru
          _
        // Predicated region
        $region29: #{tpu_custom_call.1} parent=23 // pred_check
          %p201 = pneg %p123
        $region30: #{tpu_custom_call.1} parent=23 // pred_check_branch
          %203 = sbr.rel (%p201) target = $region32
        $region31: #{tpu_custom_call.1} parent=23 // pred_region
          %p204 = scmp.lt.s32.totalorder %s20, 1
          %s205 = scalar_select %p204, %s20, 1
          %s206 = smul.addr %s205, 2
          %s207 = scalar_lea.vmem %s3, %s206
        $region32: #{tpu_custom_call.1} parent=23 // pred_fallthru
          _
      $region24: #{tpu_custom_call.1} parent=5 // pred_fallthru
        _
      %p208 = scmp.le.s32.totalorder 1, %s13
      %p209 = scmp.lt.s32.totalorder %s13, 3
      %p210 = pnand %p208, %p209
      %p211 = pneg %p210
      // Predicated region
      $region33: #{tpu_custom_call.1} parent=5 // pred_check
        _
      $region34: #{tpu_custom_call.1} parent=5 // pred_check_branch
        %213 = sbr.rel (%p210) target = $region36
      $region35: #{tpu_custom_call.1} parent=5 // pred_region
        %s214 = ssub.s32 %s13, 1
        %s215 = smul.u32 4, %s23
        %p216 = scmp.lt.s32.totalorder %s215, 3
        %s217 = scalar_select %p216, %s215, 3
        %s218 = smul.addr %s217, 8
        %s219 = scalar_lea.vmem %s0, %s218
        %p220 = pneg %p51
        %p221 = pneg %p48
        %s222 = smul.u32 4, %s23
        %p223 = scmp.lt.s32.totalorder %s222, 3
        %s224 = scalar_select %p223, %s222, 3
        %s225 = smul.addr %s224, 8
        %s226 = scalar_lea.vmem %s1, %s225
        %p227 = pneg %p77
        %p228 = pneg %p74
        %p229 = scmp.lt.s32.totalorder %s22, 1
        %s230 = scalar_select %p229, %s22, 1
        %s231 = smul.addr %s230, 2
        %s232 = scalar_lea.vmem %s2, %s231
        %p233 = pneg %p103
        %p234 = pneg %p100
        %p235 = scmp.lt.s32.totalorder %s22, 1
        %s236 = scalar_select %p235, %s22, 1
        %s237 = smul.addr %s236, 2
        %s238 = scalar_lea.vmem %s3, %s237
        %p239 = pneg %p129
        %p240 = pneg %p126
        %p241 = pneg %p157
        %p242 = pneg %p154
        %s243 = sand.u32 %s144, 1
        %s244 = scalar_lea.sflag [#allocation3], %s243
        %s245 = sand.u32 %s144, 1
        %s246 = smul.addr %s245, 128
        %s247 = scalar_lea.vmem [#allocation2], %s246
        %s248 = smul.u32 4, %s23
        %p249 = scmp.lt.s32.totalorder %s248, 3
        %s250 = scalar_select %p249, %s248, 3
        %s251 = smul.addr %s250, 8
        %s252 = scalar_lea.vmem %s0, %s251
        %s253 = smul.u32 4, %s23
        %s254 = smul.u32 4, %s23
        %p255 = scmp.lt.s32.totalorder %s254, 3
        %s256 = scalar_select %p255, %s254, 3
        %s257 = smul.addr %s256, 8
        %s258 = scalar_lea.vmem %s1, %s257
        %s259 = smul.u32 4, %s23
        %p260 = scmp.lt.s32.totalorder %s22, 1
        %s261 = scalar_select %p260, %s22, 1
        %s262 = smul.addr %s261, 2
        %s263 = scalar_lea.vmem %s2, %s262
        %p264 = scmp.lt.s32.totalorder %s22, 1
        %s265 = scalar_select %p264, %s22, 1
        %s266 = smul.addr %s265, 2
        %s267 = scalar_lea.vmem %s3, %s266
        %s268 = smul.u32 4, %s23
        %v269 = vld [vmem:[%s252] sm:$0xff]
        %v270 = vld [vmem:[%s252 + $0x8] sm:$0xff]
        %v271 = vld [vmem:[%s252 + $0x10] sm:$0xff]
        %v272 = vld [vmem:[%s252 + $0x18] sm:$0xff]
        %v273 = vld [vmem:[%s263] sm:$0x3]
        %275 = vset.pattern.permute.xlu0 0
        %276 = vperm.xlu0 %275, %v269
        %v277 = vpop.permute.xlu0 %276
        %280 = vset.pattern.permute.xlu0 0
        %281 = vperm.xlu0 %280, %v270
        %v282 = vpop.permute.xlu0 %281
        %285 = vset.pattern.permute.xlu0 0
        %286 = vperm.xlu0 %285, %v271
        %v287 = vpop.permute.xlu0 %286
        %290 = vset.pattern.permute.xlu0 0
        %291 = vperm.xlu0 %290, %v272
        %v292 = vpop.permute.xlu0 %291
        %v295 = vlaneseq
        %v296 = vshrl.u32 %v295, 7
        %v297 = vsub.s32 0, %v296
        %v298 = vrot.slane %v273, %v297
        %v299 = vlaneseq
        %v300 = vshrl.u32 %v299, 7
        %v301 = vsub.s32 1, %v300
        %v302 = vrot.slane %v273, %v301
        %v305 = vmul.f32 %v277, %v298
        %v306 = vmul.f32 %v277, %v302
        %v307 = vmul.f32 %v282, %v298
        %v308 = vmul.f32 %v282, %v302
        %v309 = vmul.f32 %v287, %v298
        %v310 = vmul.f32 %v287, %v302
        %v311 = vmul.f32 %v292, %v298
        %v312 = vmul.f32 %v292, %v302
        %v313 = vld [vmem:[%s258] sm:$0xff]
        %v314 = vld [vmem:[%s258 + $0x8] sm:$0xff]
        %v315 = vld [vmem:[%s258 + $0x10] sm:$0xff]
        %v316 = vld [vmem:[%s258 + $0x18] sm:$0xff]
        %v317 = vld [vmem:[%s267] sm:$0x3]
        %319 = vset.pattern.permute.xlu0 0
        %320 = vperm.xlu0 %319, %v313
        %v321 = vpop.permute.xlu0 %320
        %324 = vset.pattern.permute.xlu0 0
        %325 = vperm.xlu0 %324, %v314
        %v326 = vpop.permute.xlu0 %325
        %329 = vset.pattern.permute.xlu0 0
        %330 = vperm.xlu0 %329, %v315
        %v331 = vpop.permute.xlu0 %330
        %334 = vset.pattern.permute.xlu0 0
        %335 = vperm.xlu0 %334, %v316
        %v336 = vpop.permute.xlu0 %335
        %v339 = vlaneseq
        %v340 = vshrl.u32 %v339, 7
        %v341 = vsub.s32 0, %v340
        %v342 = vrot.slane %v317, %v341
        %v343 = vlaneseq
        %v344 = vshrl.u32 %v343, 7
        %v345 = vsub.s32 1, %v344
        %v346 = vrot.slane %v317, %v345
        %v349 = vmul.f32 %v321, %v342
        %v350 = vmul.f32 %v321, %v346
        %v351 = vmul.f32 %v326, %v342
        %v352 = vmul.f32 %v326, %v346
        %v353 = vmul.f32 %v331, %v342
        %v354 = vmul.f32 %v331, %v346
        %v355 = vmul.f32 %v336, %v342
        %v356 = vmul.f32 %v336, %v346
        %v357 = vadd.f32 %v305, %v349
        %v358 = vadd.f32 %v306, %v350
        %v359 = vadd.f32 %v307, %v351
        %v360 = vadd.f32 %v308, %v352
        %v361 = vadd.f32 %v309, %v353
        %v362 = vadd.f32 %v310, %v354
        %v363 = vadd.f32 %v311, %v355
        %v364 = vadd.f32 %v312, %v356
        %v365 = vand.u32 2147483647, %v357
        %vm366 = vcmp.le.f32.partialorder %v365, 0.7853982
        %vm367 = vcmp.lt.s32.totalorder %v357, 0
        %v368 = vand.u32 %v357, 2139095040
        %v369 = vshrl.u32 %v368, 23
        %v370 = vsub.s32 %v369, 127
        %v371 = vand.u32 2147483647, %v357
        %v372 = vand.u32 %v371, 8388607
        %v373 = vor.u32 %v372, 8388608
        %v374 = vsub.s32 0, %v373
        %v375 = vadd.s32 %v370, 1
        %vm376 = vcmp.gt.s32.totalorder %v375, 0
        %v377 = vsel %vm376, %v375, 0
        %v378 = vshrl.u32 %v377, 5
        %v379 = vand.u32 %v377, 31
        %v380 = vsub.s32 32, %v379
        %v381 = vshrl.u32 683565275, %v380
        %v382 = vshll.u32 683565275, %v379
        %v383 = vshrl.u32 2475754826, %v380
        %v384 = vor.u32 %v382, %v383
        %v385 = vshll.u32 2475754826, %v379
        %v386 = vshrl.u32 2131351028, %v380
        %v387 = vor.u32 %v385, %v386
        %v388 = vshll.u32 2131351028, %v379
        %v389 = vshrl.u32 2102212464, %v380
        %v390 = vor.u32 %v388, %v389
        %v391 = vshll.u32 2102212464, %v379
        %v392 = vshrl.u32 920167782, %v380
        %v393 = vor.u32 %v391, %v392
        %v394 = vshll.u32 920167782, %v379
        %v395 = vshrl.u32 1326507024, %v380
        %v396 = vor.u32 %v394, %v395
        %vm397 = vcmp.lt.s32.totalorder %v378, 1
        %vm398 = vcmp.lt.s32.totalorder %v378, 2
        %vm399 = vcmp.lt.s32.totalorder %v378, 3
        %vm400 = vcmp.lt.s32.totalorder %v378, 4
        %v401 = vsel %vm397, %v381, %v384
        %v402 = vsel %vm400, %v390, 2102212464
        %v403 = vsel %vm399, %v387, %v402
        %v404 = vsel %vm398, %v401, %v403
        %v405 = vsel %vm397, %v384, %v387
        %v406 = vsel %vm400, %v393, 920167782
        %v407 = vsel %vm399, %v390, %v406
        %v408 = vsel %vm398, %v405, %v407
        %v409 = vsel %vm397, %v387, %v390
        %v410 = vsel %vm400, %v396, 1326507024
        %v411 = vsel %vm399, %v393, %v410
        %v412 = vsel %vm398, %v409, %v411
        %v413 = vshll.u32 %v373, 8
        %v414 = vmul.u32.u64.compose %v413, %v412
        %v415 = vextract.low.u32 %v414
        %v416 = vextract.high.u32 %v414
        %v417 = vmul.u32.u64.compose %v413, %v408
        %v418 = vextract.low.u32 %v417
        %v419 = vextract.high.u32 %v417
        %v420 = vmul.u32 %v413, %v404
        %v421 = vadd.s32 %v416, %v418
        %vm422 = vc.u32 %v416, %v418
        %v423 = vadd.s32 %v419, 1
        %v424 = vsel %vm422, %v423, %v419
        %v425 = vadd.s32 %v420, %v424
        %v426 = vadd.s32 %v425, 536870912
        %v427 = vshrl.u32 %v426, 30
        %v428 = vshll.u32 %v427, 30
        %v429 = vsub.s32 %v425, %v428
        %vm430 = vcmp.lt.s32.totalorder %v429, 0
        %v431 = vsub.s32 0, %v429
        %v432 = vsel %vm430, %v431, %v429
        %v433 = vclz %v432
        %v434 = vsub.s32 %v433, 2
        %vm435 = vcmp.gt.s32.totalorder 0, %v434
        %v436 = vsel %vm435, 0, %v434
        %v437 = vsub.s32 32, %v436
        %v438 = vshll.u32 %v429, %v436
        %v439 = vshrl.u32 %v421, %v437
        %v440 = vor.u32 %v438, %v439
        %v441 = vsub.s32 4294967266, %v436
        %v442 = vadd.s32 %v441, 127
        %v443 = vshll.u32 %v442, 23
        %v444 = vor.u32 4788187, %v443
        %v445 = vand.u32 2147483647, %v444
        %v447 = vcvt.s32.f32 %v440
        %v448 = vmul.f32 %v447, %v445
        %v449 = vxor.u32 %v448, 2147483648
        %v450 = vsel %vm367, %v449, %v448
        %v451 = vsub.s32 4, %v427
        %v452 = vsel %vm367, %v451, %v427
        %v453 = vsel %vm366, %v357, %v450
        %v454 = vsel %vm366, 0, %v452
        %v455 = vcosq.f32.pop %v453
        %v456 = vsinq.f32.pop %v453
        %vm457 = vweird.f32 %v357
        %v458 = vadd.s32 %v454, 3
        %v459 = vand.u32 %v458, 3
        %vm460 = vcmp.lt.s32.totalorder %v459, 2
        %vm461 = vcmp.eq.s32.totalorder %v459, 0
        %v462 = vxor.u32 %v456, 2147483648
        %v463 = vsel %vm461, %v455, %v462
        %vm464 = vcmp.eq.s32.totalorder %v459, 2
        %v465 = vxor.u32 %v455, 2147483648
        %v466 = vsel %vm464, %v465, %v456
        %v467 = vsel %vm460, %v463, %v466
        %v468 = vsel %vm457, nan, %v467
        %v469 = vand.u32 2147483647, %v358
        %vm470 = vcmp.le.f32.partialorder %v469, 0.7853982
        %vm471 = vcmp.lt.s32.totalorder %v358, 0
        %v472 = vand.u32 %v358, 2139095040
        %v473 = vshrl.u32 %v472, 23
        %v474 = vsub.s32 %v473, 127
        %v475 = vand.u32 2147483647, %v358
        %v476 = vand.u32 %v475, 8388607
        %v477 = vor.u32 %v476, 8388608
        %v478 = vsub.s32 0, %v477
        %v479 = vadd.s32 %v474, 1
        %vm480 = vcmp.gt.s32.totalorder %v479, 0
        %v481 = vsel %vm480, %v479, 0
        %v482 = vshrl.u32 %v481, 5
        %v483 = vand.u32 %v481, 31
        %v484 = vsub.s32 32, %v483
        %v485 = vshrl.u32 683565275, %v484
        %v486 = vshll.u32 683565275, %v483
        %v487 = vshrl.u32 2475754826, %v484
        %v488 = vor.u32 %v486, %v487
        %v489 = vshll.u32 2475754826, %v483
        %v490 = vshrl.u32 2131351028, %v484
        %v491 = vor.u32 %v489, %v490
        %v492 = vshll.u32 2131351028, %v483
        %v493 = vshrl.u32 2102212464, %v484
        %v494 = vor.u32 %v492, %v493
        %v495 = vshll.u32 2102212464, %v483
        %v496 = vshrl.u32 920167782, %v484
        %v497 = vor.u32 %v495, %v496
        %v498 = vshll.u32 920167782, %v483
        %v499 = vshrl.u32 1326507024, %v484
        %v500 = vor.u32 %v498, %v499
        %vm501 = vcmp.lt.s32.totalorder %v482, 1
        %vm502 = vcmp.lt.s32.totalorder %v482, 2
        %vm503 = vcmp.lt.s32.totalorder %v482, 3
        %vm504 = vcmp.lt.s32.totalorder %v482, 4
        %v505 = vsel %vm501, %v485, %v488
        %v506 = vsel %vm504, %v494, 2102212464
        %v507 = vsel %vm503, %v491, %v506
        %v508 = vsel %vm502, %v505, %v507
        %v509 = vsel %vm501, %v488, %v491
        %v510 = vsel %vm504, %v497, 920167782
        %v511 = vsel %vm503, %v494, %v510
        %v512 = vsel %vm502, %v509, %v511
        %v513 = vsel %vm501, %v491, %v494
        %v514 = vsel %vm504, %v500, 1326507024
        %v515 = vsel %vm503, %v497, %v514
        %v516 = vsel %vm502, %v513, %v515
        %v517 = vshll.u32 %v477, 8
        %v518 = vmul.u32.u64.compose %v517, %v516
        %v519 = vextract.low.u32 %v518
        %v520 = vextract.high.u32 %v518
        %v521 = vmul.u32.u64.compose %v517, %v512
        %v522 = vextract.low.u32 %v521
        %v523 = vextract.high.u32 %v521
        %v524 = vmul.u32 %v517, %v508
        %v525 = vadd.s32 %v520, %v522
        %vm526 = vc.u32 %v520, %v522
        %v527 = vadd.s32 %v523, 1
        %v528 = vsel %vm526, %v527, %v523
        %v529 = vadd.s32 %v524, %v528
        %v530 = vadd.s32 %v529, 536870912
        %v531 = vshrl.u32 %v530, 30
        %v532 = vshll.u32 %v531, 30
        %v533 = vsub.s32 %v529, %v532
        %vm534 = vcmp.lt.s32.totalorder %v533, 0
        %v535 = vsub.s32 0, %v533
        %v536 = vsel %vm534, %v535, %v533
        %v537 = vclz %v536
        %v538 = vsub.s32 %v537, 2
        %vm539 = vcmp.gt.s32.totalorder 0, %v538
        %v540 = vsel %vm539, 0, %v538
        %v541 = vsub.s32 32, %v540
        %v542 = vshll.u32 %v533, %v540
        %v543 = vshrl.u32 %v525, %v541
        %v544 = vor.u32 %v542, %v543
        %v545 = vsub.s32 4294967266, %v540
        %v546 = vadd.s32 %v545, 127
        %v547 = vshll.u32 %v546, 23
        %v548 = vor.u32 4788187, %v547
        %v549 = vand.u32 2147483647, %v548
        %v551 = vcvt.s32.f32 %v544
        %v552 = vmul.f32 %v551, %v549
        %v553 = vxor.u32 %v552, 2147483648
        %v554 = vsel %vm471, %v553, %v552
        %v555 = vsub.s32 4, %v531
        %v556 = vsel %vm471, %v555, %v531
        %v557 = vsel %vm470, %v358, %v554
        %v558 = vsel %vm470, 0, %v556
        %v559 = vcosq.f32.pop %v557
        %v560 = vsinq.f32.pop %v557
        %vm561 = vweird.f32 %v358
        %v562 = vadd.s32 %v558, 3
        %v563 = vand.u32 %v562, 3
        %vm564 = vcmp.lt.s32.totalorder %v563, 2
        %vm565 = vcmp.eq.s32.totalorder %v563, 0
        %v566 = vxor.u32 %v560, 2147483648
        %v567 = vsel %vm565, %v559, %v566
        %vm568 = vcmp.eq.s32.totalorder %v563, 2
        %v569 = vxor.u32 %v559, 2147483648
        %v570 = vsel %vm568, %v569, %v560
        %v571 = vsel %vm564, %v567, %v570
        %v572 = vsel %vm561, nan, %v571
        %v573 = vand.u32 2147483647, %v359
        %vm574 = vcmp.le.f32.partialorder %v573, 0.7853982
        %vm575 = vcmp.lt.s32.totalorder %v359, 0
        %v576 = vand.u32 %v359, 2139095040
        %v577 = vshrl.u32 %v576, 23
        %v578 = vsub.s32 %v577, 127
        %v579 = vand.u32 2147483647, %v359
        %v580 = vand.u32 %v579, 8388607
        %v581 = vor.u32 %v580, 8388608
        %v582 = vsub.s32 0, %v581
        %v583 = vadd.s32 %v578, 1
        %vm584 = vcmp.gt.s32.totalorder %v583, 0
        %v585 = vsel %vm584, %v583, 0
        %v586 = vshrl.u32 %v585, 5
        %v587 = vand.u32 %v585, 31
        %v588 = vsub.s32 32, %v587
        %v589 = vshrl.u32 683565275, %v588
        %v590 = vshll.u32 683565275, %v587
        %v591 = vshrl.u32 2475754826, %v588
        %v592 = vor.u32 %v590, %v591
        %v593 = vshll.u32 2475754826, %v587
        %v594 = vshrl.u32 2131351028, %v588
        %v595 = vor.u32 %v593, %v594
        %v596 = vshll.u32 2131351028, %v587
        %v597 = vshrl.u32 2102212464, %v588
        %v598 = vor.u32 %v596, %v597
        %v599 = vshll.u32 2102212464, %v587
        %v600 = vshrl.u32 920167782, %v588
        %v601 = vor.u32 %v599, %v600
        %v602 = vshll.u32 920167782, %v587
        %v603 = vshrl.u32 1326507024, %v588
        %v604 = vor.u32 %v602, %v603
        %vm605 = vcmp.lt.s32.totalorder %v586, 1
        %vm606 = vcmp.lt.s32.totalorder %v586, 2
        %vm607 = vcmp.lt.s32.totalorder %v586, 3
        %vm608 = vcmp.lt.s32.totalorder %v586, 4
        %v609 = vsel %vm605, %v589, %v592
        %v610 = vsel %vm608, %v598, 2102212464
        %v611 = vsel %vm607, %v595, %v610
        %v612 = vsel %vm606, %v609, %v611
        %v613 = vsel %vm605, %v592, %v595
        %v614 = vsel %vm608, %v601, 920167782
        %v615 = vsel %vm607, %v598, %v614
        %v616 = vsel %vm606, %v613, %v615
        %v617 = vsel %vm605, %v595, %v598
        %v618 = vsel %vm608, %v604, 1326507024
        %v619 = vsel %vm607, %v601, %v618
        %v620 = vsel %vm606, %v617, %v619
        %v621 = vshll.u32 %v581, 8
        %v622 = vmul.u32.u64.compose %v621, %v620
        %v623 = vextract.low.u32 %v622
        %v624 = vextract.high.u32 %v622
        %v625 = vmul.u32.u64.compose %v621, %v616
        %v626 = vextract.low.u32 %v625
        %v627 = vextract.high.u32 %v625
        %v628 = vmul.u32 %v621, %v612
        %v629 = vadd.s32 %v624, %v626
        %vm630 = vc.u32 %v624, %v626
        %v631 = vadd.s32 %v627, 1
        %v632 = vsel %vm630, %v631, %v627
        %v633 = vadd.s32 %v628, %v632
        %v634 = vadd.s32 %v633, 536870912
        %v635 = vshrl.u32 %v634, 30
        %v636 = vshll.u32 %v635, 30
        %v637 = vsub.s32 %v633, %v636
        %vm638 = vcmp.lt.s32.totalorder %v637, 0
        %v639 = vsub.s32 0, %v637
        %v640 = vsel %vm638, %v639, %v637
        %v641 = vclz %v640
        %v642 = vsub.s32 %v641, 2
        %vm643 = vcmp.gt.s32.totalorder 0, %v642
        %v644 = vsel %vm643, 0, %v642
        %v645 = vsub.s32 32, %v644
        %v646 = vshll.u32 %v637, %v644
        %v647 = vshrl.u32 %v629, %v645
        %v648 = vor.u32 %v646, %v647
        %v649 = vsub.s32 4294967266, %v644
        %v650 = vadd.s32 %v649, 127
        %v651 = vshll.u32 %v650, 23
        %v652 = vor.u32 4788187, %v651
        %v653 = vand.u32 2147483647, %v652
        %v655 = vcvt.s32.f32 %v648
        %v656 = vmul.f32 %v655, %v653
        %v657 = vxor.u32 %v656, 2147483648
        %v658 = vsel %vm575, %v657, %v656
        %v659 = vsub.s32 4, %v635
        %v660 = vsel %vm575, %v659, %v635
        %v661 = vsel %vm574, %v359, %v658
        %v662 = vsel %vm574, 0, %v660
        %v663 = vcosq.f32.pop %v661
        %v664 = vsinq.f32.pop %v661
        %vm665 = vweird.f32 %v359
        %v666 = vadd.s32 %v662, 3
        %v667 = vand.u32 %v666, 3
        %vm668 = vcmp.lt.s32.totalorder %v667, 2
        %vm669 = vcmp.eq.s32.totalorder %v667, 0
        %v670 = vxor.u32 %v664, 2147483648
        %v671 = vsel %vm669, %v663, %v670
        %vm672 = vcmp.eq.s32.totalorder %v667, 2
        %v673 = vxor.u32 %v663, 2147483648
        %v674 = vsel %vm672, %v673, %v664
        %v675 = vsel %vm668, %v671, %v674
        %v676 = vsel %vm665, nan, %v675
        %v677 = vand.u32 2147483647, %v360
        %vm678 = vcmp.le.f32.partialorder %v677, 0.7853982
        %vm679 = vcmp.lt.s32.totalorder %v360, 0
        %v680 = vand.u32 %v360, 2139095040
        %v681 = vshrl.u32 %v680, 23
        %v682 = vsub.s32 %v681, 127
        %v683 = vand.u32 2147483647, %v360
        %v684 = vand.u32 %v683, 8388607
        %v685 = vor.u32 %v684, 8388608
        %v686 = vsub.s32 0, %v685
        %v687 = vadd.s32 %v682, 1
        %vm688 = vcmp.gt.s32.totalorder %v687, 0
        %v689 = vsel %vm688, %v687, 0
        %v690 = vshrl.u32 %v689, 5
        %v691 = vand.u32 %v689, 31
        %v692 = vsub.s32 32, %v691
        %v693 = vshrl.u32 683565275, %v692
        %v694 = vshll.u32 683565275, %v691
        %v695 = vshrl.u32 2475754826, %v692
        %v696 = vor.u32 %v694, %v695
        %v697 = vshll.u32 2475754826, %v691
        %v698 = vshrl.u32 2131351028, %v692
        %v699 = vor.u32 %v697, %v698
        %v700 = vshll.u32 2131351028, %v691
        %v701 = vshrl.u32 2102212464, %v692
        %v702 = vor.u32 %v700, %v701
        %v703 = vshll.u32 2102212464, %v691
        %v704 = vshrl.u32 920167782, %v692
        %v705 = vor.u32 %v703, %v704
        %v706 = vshll.u32 920167782, %v691
        %v707 = vshrl.u32 1326507024, %v692
        %v708 = vor.u32 %v706, %v707
        %vm709 = vcmp.lt.s32.totalorder %v690, 1
        %vm710 = vcmp.lt.s32.totalorder %v690, 2
        %vm711 = vcmp.lt.s32.totalorder %v690, 3
        %vm712 = vcmp.lt.s32.totalorder %v690, 4
        %v713 = vsel %vm709, %v693, %v696
        %v714 = vsel %vm712, %v702, 2102212464
        %v715 = vsel %vm711, %v699, %v714
        %v716 = vsel %vm710, %v713, %v715
        %v717 = vsel %vm709, %v696, %v699
        %v718 = vsel %vm712, %v705, 920167782
        %v719 = vsel %vm711, %v702, %v718
        %v720 = vsel %vm710, %v717, %v719
        %v721 = vsel %vm709, %v699, %v702
        %v722 = vsel %vm712, %v708, 1326507024
        %v723 = vsel %vm711, %v705, %v722
        %v724 = vsel %vm710, %v721, %v723
        %v725 = vshll.u32 %v685, 8
        %v726 = vmul.u32.u64.compose %v725, %v724
        %v727 = vextract.low.u32 %v726
        %v728 = vextract.high.u32 %v726
        %v729 = vmul.u32.u64.compose %v725, %v720
        %v730 = vextract.low.u32 %v729
        %v731 = vextract.high.u32 %v729
        %v732 = vmul.u32 %v725, %v716
        %v733 = vadd.s32 %v728, %v730
        %vm734 = vc.u32 %v728, %v730
        %v735 = vadd.s32 %v731, 1
        %v736 = vsel %vm734, %v735, %v731
        %v737 = vadd.s32 %v732, %v736
        %v738 = vadd.s32 %v737, 536870912
        %v739 = vshrl.u32 %v738, 30
        %v740 = vshll.u32 %v739, 30
        %v741 = vsub.s32 %v737, %v740
        %vm742 = vcmp.lt.s32.totalorder %v741, 0
        %v743 = vsub.s32 0, %v741
        %v744 = vsel %vm742, %v743, %v741
        %v745 = vclz %v744
        %v746 = vsub.s32 %v745, 2
        %vm747 = vcmp.gt.s32.totalorder 0, %v746
        %v748 = vsel %vm747, 0, %v746
        %v749 = vsub.s32 32, %v748
        %v750 = vshll.u32 %v741, %v748
        %v751 = vshrl.u32 %v733, %v749
        %v752 = vor.u32 %v750, %v751
        %v753 = vsub.s32 4294967266, %v748
        %v754 = vadd.s32 %v753, 127
        %v755 = vshll.u32 %v754, 23
        %v756 = vor.u32 4788187, %v755
        %v757 = vand.u32 2147483647, %v756
        %v759 = vcvt.s32.f32 %v752
        %v760 = vmul.f32 %v759, %v757
        %v761 = vxor.u32 %v760, 2147483648
        %v762 = vsel %vm679, %v761, %v760
        %v763 = vsub.s32 4, %v739
        %v764 = vsel %vm679, %v763, %v739
        %v765 = vsel %vm678, %v360, %v762
        %v766 = vsel %vm678, 0, %v764
        %v767 = vcosq.f32.pop %v765
        %v768 = vsinq.f32.pop %v765
        %vm769 = vweird.f32 %v360
        %v770 = vadd.s32 %v766, 3
        %v771 = vand.u32 %v770, 3
        %vm772 = vcmp.lt.s32.totalorder %v771, 2
        %vm773 = vcmp.eq.s32.totalorder %v771, 0
        %v774 = vxor.u32 %v768, 2147483648
        %v775 = vsel %vm773, %v767, %v774
        %vm776 = vcmp.eq.s32.totalorder %v771, 2
        %v777 = vxor.u32 %v767, 2147483648
        %v778 = vsel %vm776, %v777, %v768
        %v779 = vsel %vm772, %v775, %v778
        %v780 = vsel %vm769, nan, %v779
        %v781 = vand.u32 2147483647, %v361
        %vm782 = vcmp.le.f32.partialorder %v781, 0.7853982
        %vm783 = vcmp.lt.s32.totalorder %v361, 0
        %v784 = vand.u32 %v361, 2139095040
        %v785 = vshrl.u32 %v784, 23
        %v786 = vsub.s32 %v785, 127
        %v787 = vand.u32 2147483647, %v361
        %v788 = vand.u32 %v787, 8388607
        %v789 = vor.u32 %v788, 8388608
        %v790 = vsub.s32 0, %v789
        %v791 = vadd.s32 %v786, 1
        %vm792 = vcmp.gt.s32.totalorder %v791, 0
        %v793 = vsel %vm792, %v791, 0
        %v794 = vshrl.u32 %v793, 5
        %v795 = vand.u32 %v793, 31
        %v796 = vsub.s32 32, %v795
        %v797 = vshrl.u32 683565275, %v796
        %v798 = vshll.u32 683565275, %v795
        %v799 = vshrl.u32 2475754826, %v796
        %v800 = vor.u32 %v798, %v799
        %v801 = vshll.u32 2475754826, %v795
        %v802 = vshrl.u32 2131351028, %v796
        %v803 = vor.u32 %v801, %v802
        %v804 = vshll.u32 2131351028, %v795
        %v805 = vshrl.u32 2102212464, %v796
        %v806 = vor.u32 %v804, %v805
        %v807 = vshll.u32 2102212464, %v795
        %v808 = vshrl.u32 920167782, %v796
        %v809 = vor.u32 %v807, %v808
        %v810 = vshll.u32 920167782, %v795
        %v811 = vshrl.u32 1326507024, %v796
        %v812 = vor.u32 %v810, %v811
        %vm813 = vcmp.lt.s32.totalorder %v794, 1
        %vm814 = vcmp.lt.s32.totalorder %v794, 2
        %vm815 = vcmp.lt.s32.totalorder %v794, 3
        %vm816 = vcmp.lt.s32.totalorder %v794, 4
        %v817 = vsel %vm813, %v797, %v800
        %v818 = vsel %vm816, %v806, 2102212464
        %v819 = vsel %vm815, %v803, %v818
        %v820 = vsel %vm814, %v817, %v819
        %v821 = vsel %vm813, %v800, %v803
        %v822 = vsel %vm816, %v809, 920167782
        %v823 = vsel %vm815, %v806, %v822
        %v824 = vsel %vm814, %v821, %v823
        %v825 = vsel %vm813, %v803, %v806
        %v826 = vsel %vm816, %v812, 1326507024
        %v827 = vsel %vm815, %v809, %v826
        %v828 = vsel %vm814, %v825, %v827
        %v829 = vshll.u32 %v789, 8
        %v830 = vmul.u32.u64.compose %v829, %v828
        %v831 = vextract.low.u32 %v830
        %v832 = vextract.high.u32 %v830
        %v833 = vmul.u32.u64.compose %v829, %v824
        %v834 = vextract.low.u32 %v833
        %v835 = vextract.high.u32 %v833
        %v836 = vmul.u32 %v829, %v820
        %v837 = vadd.s32 %v832, %v834
        %vm838 = vc.u32 %v832, %v834
        %v839 = vadd.s32 %v835, 1
        %v840 = vsel %vm838, %v839, %v835
        %v841 = vadd.s32 %v836, %v840
        %v842 = vadd.s32 %v841, 536870912
        %v843 = vshrl.u32 %v842, 30
        %v844 = vshll.u32 %v843, 30
        %v845 = vsub.s32 %v841, %v844
        %vm846 = vcmp.lt.s32.totalorder %v845, 0
        %v847 = vsub.s32 0, %v845
        %v848 = vsel %vm846, %v847, %v845
        %v849 = vclz %v848
        %v850 = vsub.s32 %v849, 2
        %vm851 = vcmp.gt.s32.totalorder 0, %v850
        %v852 = vsel %vm851, 0, %v850
        %v853 = vsub.s32 32, %v852
        %v854 = vshll.u32 %v845, %v852
        %v855 = vshrl.u32 %v837, %v853
        %v856 = vor.u32 %v854, %v855
        %v857 = vsub.s32 4294967266, %v852
        %v858 = vadd.s32 %v857, 127
        %v859 = vshll.u32 %v858, 23
        %v860 = vor.u32 4788187, %v859
        %v861 = vand.u32 2147483647, %v860
        %v863 = vcvt.s32.f32 %v856
        %v864 = vmul.f32 %v863, %v861
        %v865 = vxor.u32 %v864, 2147483648
        %v866 = vsel %vm783, %v865, %v864
        %v867 = vsub.s32 4, %v843
        %v868 = vsel %vm783, %v867, %v843
        %v869 = vsel %vm782, %v361, %v866
        %v870 = vsel %vm782, 0, %v868
        %v871 = vcosq.f32.pop %v869
        %v872 = vsinq.f32.pop %v869
        %vm873 = vweird.f32 %v361
        %v874 = vadd.s32 %v870, 3
        %v875 = vand.u32 %v874, 3
        %vm876 = vcmp.lt.s32.totalorder %v875, 2
        %vm877 = vcmp.eq.s32.totalorder %v875, 0
        %v878 = vxor.u32 %v872, 2147483648
        %v879 = vsel %vm877, %v871, %v878
        %vm880 = vcmp.eq.s32.totalorder %v875, 2
        %v881 = vxor.u32 %v871, 2147483648
        %v882 = vsel %vm880, %v881, %v872
        %v883 = vsel %vm876, %v879, %v882
        %v884 = vsel %vm873, nan, %v883
        %v885 = vand.u32 2147483647, %v362
        %vm886 = vcmp.le.f32.partialorder %v885, 0.7853982
        %vm887 = vcmp.lt.s32.totalorder %v362, 0
        %v888 = vand.u32 %v362, 2139095040
        %v889 = vshrl.u32 %v888, 23
        %v890 = vsub.s32 %v889, 127
        %v891 = vand.u32 2147483647, %v362
        %v892 = vand.u32 %v891, 8388607
        %v893 = vor.u32 %v892, 8388608
        %v894 = vsub.s32 0, %v893
        %v895 = vadd.s32 %v890, 1
        %vm896 = vcmp.gt.s32.totalorder %v895, 0
        %v897 = vsel %vm896, %v895, 0
        %v898 = vshrl.u32 %v897, 5
        %v899 = vand.u32 %v897, 31
        %v900 = vsub.s32 32, %v899
        %v901 = vshrl.u32 683565275, %v900
        %v902 = vshll.u32 683565275, %v899
        %v903 = vshrl.u32 2475754826, %v900
        %v904 = vor.u32 %v902, %v903
        %v905 = vshll.u32 2475754826, %v899
        %v906 = vshrl.u32 2131351028, %v900
        %v907 = vor.u32 %v905, %v906
        %v908 = vshll.u32 2131351028, %v899
        %v909 = vshrl.u32 2102212464, %v900
        %v910 = vor.u32 %v908, %v909
        %v911 = vshll.u32 2102212464, %v899
        %v912 = vshrl.u32 920167782, %v900
        %v913 = vor.u32 %v911, %v912
        %v914 = vshll.u32 920167782, %v899
        %v915 = vshrl.u32 1326507024, %v900
        %v916 = vor.u32 %v914, %v915
        %vm917 = vcmp.lt.s32.totalorder %v898, 1
        %vm918 = vcmp.lt.s32.totalorder %v898, 2
        %vm919 = vcmp.lt.s32.totalorder %v898, 3
        %vm920 = vcmp.lt.s32.totalorder %v898, 4
        %v921 = vsel %vm917, %v901, %v904
        %v922 = vsel %vm920, %v910, 2102212464
        %v923 = vsel %vm919, %v907, %v922
        %v924 = vsel %vm918, %v921, %v923
        %v925 = vsel %vm917, %v904, %v907
        %v926 = vsel %vm920, %v913, 920167782
        %v927 = vsel %vm919, %v910, %v926
        %v928 = vsel %vm918, %v925, %v927
        %v929 = vsel %vm917, %v907, %v910
        %v930 = vsel %vm920, %v916, 1326507024
        %v931 = vsel %vm919, %v913, %v930
        %v932 = vsel %vm918, %v929, %v931
        %v933 = vshll.u32 %v893, 8
        %v934 = vmul.u32.u64.compose %v933, %v932
        %v935 = vextract.low.u32 %v934
        %v936 = vextract.high.u32 %v934
        %v937 = vmul.u32.u64.compose %v933, %v928
        %v938 = vextract.low.u32 %v937
        %v939 = vextract.high.u32 %v937
        %v940 = vmul.u32 %v933, %v924
        %v941 = vadd.s32 %v936, %v938
        %vm942 = vc.u32 %v936, %v938
        %v943 = vadd.s32 %v939, 1
        %v944 = vsel %vm942, %v943, %v939
        %v945 = vadd.s32 %v940, %v944
        %v946 = vadd.s32 %v945, 536870912
        %v947 = vshrl.u32 %v946, 30
        %v948 = vshll.u32 %v947, 30
        %v949 = vsub.s32 %v945, %v948
        %vm950 = vcmp.lt.s32.totalorder %v949, 0
        %v951 = vsub.s32 0, %v949
        %v952 = vsel %vm950, %v951, %v949
        %v953 = vclz %v952
        %v954 = vsub.s32 %v953, 2
        %vm955 = vcmp.gt.s32.totalorder 0, %v954
        %v956 = vsel %vm955, 0, %v954
        %v957 = vsub.s32 32, %v956
        %v958 = vshll.u32 %v949, %v956
        %v959 = vshrl.u32 %v941, %v957
        %v960 = vor.u32 %v958, %v959
        %v961 = vsub.s32 4294967266, %v956
        %v962 = vadd.s32 %v961, 127
        %v963 = vshll.u32 %v962, 23
        %v964 = vor.u32 4788187, %v963
        %v965 = vand.u32 2147483647, %v964
        %v967 = vcvt.s32.f32 %v960
        %v968 = vmul.f32 %v967, %v965
        %v969 = vxor.u32 %v968, 2147483648
        %v970 = vsel %vm887, %v969, %v968
        %v971 = vsub.s32 4, %v947
        %v972 = vsel %vm887, %v971, %v947
        %v973 = vsel %vm886, %v362, %v970
        %v974 = vsel %vm886, 0, %v972
        %v975 = vcosq.f32.pop %v973
        %v976 = vsinq.f32.pop %v973
        %vm977 = vweird.f32 %v362
        %v978 = vadd.s32 %v974, 3
        %v979 = vand.u32 %v978, 3
        %vm980 = vcmp.lt.s32.totalorder %v979, 2
        %vm981 = vcmp.eq.s32.totalorder %v979, 0
        %v982 = vxor.u32 %v976, 2147483648
        %v983 = vsel %vm981, %v975, %v982
        %vm984 = vcmp.eq.s32.totalorder %v979, 2
        %v985 = vxor.u32 %v975, 2147483648
        %v986 = vsel %vm984, %v985, %v976
        %v987 = vsel %vm980, %v983, %v986
        %v988 = vsel %vm977, nan, %v987
        %v989 = vand.u32 2147483647, %v363
        %vm990 = vcmp.le.f32.partialorder %v989, 0.7853982
        %vm991 = vcmp.lt.s32.totalorder %v363, 0
        %v992 = vand.u32 %v363, 2139095040
        %v993 = vshrl.u32 %v992, 23
        %v994 = vsub.s32 %v993, 127
        %v995 = vand.u32 2147483647, %v363
        %v996 = vand.u32 %v995, 8388607
        %v997 = vor.u32 %v996, 8388608
        %v998 = vsub.s32 0, %v997
        %v999 = vadd.s32 %v994, 1
        %vm1000 = vcmp.gt.s32.totalorder %v999, 0
        %v1001 = vsel %vm1000, %v999, 0
        %v1002 = vshrl.u32 %v1001, 5
        %v1003 = vand.u32 %v1001, 31
        %v1004 = vsub.s32 32, %v1003
        %v1005 = vshrl.u32 683565275, %v1004
        %v1006 = vshll.u32 683565275, %v1003
        %v1007 = vshrl.u32 2475754826, %v1004
        %v1008 = vor.u32 %v1006, %v1007
        %v1009 = vshll.u32 2475754826, %v1003
        %v1010 = vshrl.u32 2131351028, %v1004
        %v1011 = vor.u32 %v1009, %v1010
        %v1012 = vshll.u32 2131351028, %v1003
        %v1013 = vshrl.u32 2102212464, %v1004
        %v1014 = vor.u32 %v1012, %v1013
        %v1015 = vshll.u32 2102212464, %v1003
        %v1016 = vshrl.u32 920167782, %v1004
        %v1017 = vor.u32 %v1015, %v1016
        %v1018 = vshll.u32 920167782, %v1003
        %v1019 = vshrl.u32 1326507024, %v1004
        %v1020 = vor.u32 %v1018, %v1019
        %vm1021 = vcmp.lt.s32.totalorder %v1002, 1
        %vm1022 = vcmp.lt.s32.totalorder %v1002, 2
        %vm1023 = vcmp.lt.s32.totalorder %v1002, 3
        %vm1024 = vcmp.lt.s32.totalorder %v1002, 4
        %v1025 = vsel %vm1021, %v1005, %v1008
        %v1026 = vsel %vm1024, %v1014, 2102212464
        %v1027 = vsel %vm1023, %v1011, %v1026
        %v1028 = vsel %vm1022, %v1025, %v1027
        %v1029 = vsel %vm1021, %v1008, %v1011
        %v1030 = vsel %vm1024, %v1017, 920167782
        %v1031 = vsel %vm1023, %v1014, %v1030
        %v1032 = vsel %vm1022, %v1029, %v1031
        %v1033 = vsel %vm1021, %v1011, %v1014
        %v1034 = vsel %vm1024, %v1020, 1326507024
        %v1035 = vsel %vm1023, %v1017, %v1034
        %v1036 = vsel %vm1022, %v1033, %v1035
        %v1037 = vshll.u32 %v997, 8
        %v1038 = vmul.u32.u64.compose %v1037, %v1036
        %v1039 = vextract.low.u32 %v1038
        %v1040 = vextract.high.u32 %v1038
        %v1041 = vmul.u32.u64.compose %v1037, %v1032
        %v1042 = vextract.low.u32 %v1041
        %v1043 = vextract.high.u32 %v1041
        %v1044 = vmul.u32 %v1037, %v1028
        %v1045 = vadd.s32 %v1040, %v1042
        %vm1046 = vc.u32 %v1040, %v1042
        %v1047 = vadd.s32 %v1043, 1
        %v1048 = vsel %vm1046, %v1047, %v1043
        %v1049 = vadd.s32 %v1044, %v1048
        %v1050 = vadd.s32 %v1049, 536870912
        %v1051 = vshrl.u32 %v1050, 30
        %v1052 = vshll.u32 %v1051, 30
        %v1053 = vsub.s32 %v1049, %v1052
        %vm1054 = vcmp.lt.s32.totalorder %v1053, 0
        %v1055 = vsub.s32 0, %v1053
        %v1056 = vsel %vm1054, %v1055, %v1053
        %v1057 = vclz %v1056
        %v1058 = vsub.s32 %v1057, 2
        %vm1059 = vcmp.gt.s32.totalorder 0, %v1058
        %v1060 = vsel %vm1059, 0, %v1058
        %v1061 = vsub.s32 32, %v1060
        %v1062 = vshll.u32 %v1053, %v1060
        %v1063 = vshrl.u32 %v1045, %v1061
        %v1064 = vor.u32 %v1062, %v1063
        %v1065 = vsub.s32 4294967266, %v1060
        %v1066 = vadd.s32 %v1065, 127
        %v1067 = vshll.u32 %v1066, 23
        %v1068 = vor.u32 4788187, %v1067
        %v1069 = vand.u32 2147483647, %v1068
        %v1071 = vcvt.s32.f32 %v1064
        %v1072 = vmul.f32 %v1071, %v1069
        %v1073 = vxor.u32 %v1072, 2147483648
        %v1074 = vsel %vm991, %v1073, %v1072
        %v1075 = vsub.s32 4, %v1051
        %v1076 = vsel %vm991, %v1075, %v1051
        %v1077 = vsel %vm990, %v363, %v1074
        %v1078 = vsel %vm990, 0, %v1076
        %v1079 = vcosq.f32.pop %v1077
        %v1080 = vsinq.f32.pop %v1077
        %vm1081 = vweird.f32 %v363
        %v1082 = vadd.s32 %v1078, 3
        %v1083 = vand.u32 %v1082, 3
        %vm1084 = vcmp.lt.s32.totalorder %v1083, 2
        %vm1085 = vcmp.eq.s32.totalorder %v1083, 0
        %v1086 = vxor.u32 %v1080, 2147483648
        %v1087 = vsel %vm1085, %v1079, %v1086
        %vm1088 = vcmp.eq.s32.totalorder %v1083, 2
        %v1089 = vxor.u32 %v1079, 2147483648
        %v1090 = vsel %vm1088, %v1089, %v1080
        %v1091 = vsel %vm1084, %v1087, %v1090
        %v1092 = vsel %vm1081, nan, %v1091
        %v1093 = vand.u32 2147483647, %v364
        %vm1094 = vcmp.le.f32.partialorder %v1093, 0.7853982
        %vm1095 = vcmp.lt.s32.totalorder %v364, 0
        %v1096 = vand.u32 %v364, 2139095040
        %v1097 = vshrl.u32 %v1096, 23
        %v1098 = vsub.s32 %v1097, 127
        %v1099 = vand.u32 2147483647, %v364
        %v1100 = vand.u32 %v1099, 8388607
        %v1101 = vor.u32 %v1100, 8388608
        %v1102 = vsub.s32 0, %v1101
        %v1103 = vadd.s32 %v1098, 1
        %vm1104 = vcmp.gt.s32.totalorder %v1103, 0
        %v1105 = vsel %vm1104, %v1103, 0
        %v1106 = vshrl.u32 %v1105, 5
        %v1107 = vand.u32 %v1105, 31
        %v1108 = vsub.s32 32, %v1107
        %v1109 = vshrl.u32 683565275, %v1108
        %v1110 = vshll.u32 683565275, %v1107
        %v1111 = vshrl.u32 2475754826, %v1108
        %v1112 = vor.u32 %v1110, %v1111
        %v1113 = vshll.u32 2475754826, %v1107
        %v1114 = vshrl.u32 2131351028, %v1108
        %v1115 = vor.u32 %v1113, %v1114
        %v1116 = vshll.u32 2131351028, %v1107
        %v1117 = vshrl.u32 2102212464, %v1108
        %v1118 = vor.u32 %v1116, %v1117
        %v1119 = vshll.u32 2102212464, %v1107
        %v1120 = vshrl.u32 920167782, %v1108
        %v1121 = vor.u32 %v1119, %v1120
        %v1122 = vshll.u32 920167782, %v1107
        %v1123 = vshrl.u32 1326507024, %v1108
        %v1124 = vor.u32 %v1122, %v1123
        %vm1125 = vcmp.lt.s32.totalorder %v1106, 1
        %vm1126 = vcmp.lt.s32.totalorder %v1106, 2
        %vm1127 = vcmp.lt.s32.totalorder %v1106, 3
        %vm1128 = vcmp.lt.s32.totalorder %v1106, 4
        %v1129 = vsel %vm1125, %v1109, %v1112
        %v1130 = vsel %vm1128, %v1118, 2102212464
        %v1131 = vsel %vm1127, %v1115, %v1130
        %v1132 = vsel %vm1126, %v1129, %v1131
        %v1133 = vsel %vm1125, %v1112, %v1115
        %v1134 = vsel %vm1128, %v1121, 920167782
        %v1135 = vsel %vm1127, %v1118, %v1134
        %v1136 = vsel %vm1126, %v1133, %v1135
        %v1137 = vsel %vm1125, %v1115, %v1118
        %v1138 = vsel %vm1128, %v1124, 1326507024
        %v1139 = vsel %vm1127, %v1121, %v1138
        %v1140 = vsel %vm1126, %v1137, %v1139
        %v1141 = vshll.u32 %v1101, 8
        %v1142 = vmul.u32.u64.compose %v1141, %v1140
        %v1143 = vextract.low.u32 %v1142
        %v1144 = vextract.high.u32 %v1142
        %v1145 = vmul.u32.u64.compose %v1141, %v1136
        %v1146 = vextract.low.u32 %v1145
        %v1147 = vextract.high.u32 %v1145
        %v1148 = vmul.u32 %v1141, %v1132
        %v1149 = vadd.s32 %v1144, %v1146
        %vm1150 = vc.u32 %v1144, %v1146
        %v1151 = vadd.s32 %v1147, 1
        %v1152 = vsel %vm1150, %v1151, %v1147
        %v1153 = vadd.s32 %v1148, %v1152
        %v1154 = vadd.s32 %v1153, 536870912
        %v1155 = vshrl.u32 %v1154, 30
        %v1156 = vshll.u32 %v1155, 30
        %v1157 = vsub.s32 %v1153, %v1156
        %vm1158 = vcmp.lt.s32.totalorder %v1157, 0
        %v1159 = vsub.s32 0, %v1157
        %v1160 = vsel %vm1158, %v1159, %v1157
        %v1161 = vclz %v1160
        %v1162 = vsub.s32 %v1161, 2
        %vm1163 = vcmp.gt.s32.totalorder 0, %v1162
        %v1164 = vsel %vm1163, 0, %v1162
        %v1165 = vsub.s32 32, %v1164
        %v1166 = vshll.u32 %v1157, %v1164
        %v1167 = vshrl.u32 %v1149, %v1165
        %v1168 = vor.u32 %v1166, %v1167
        %v1169 = vsub.s32 4294967266, %v1164
        %v1170 = vadd.s32 %v1169, 127
        %v1171 = vshll.u32 %v1170, 23
        %v1172 = vor.u32 4788187, %v1171
        %v1173 = vand.u32 2147483647, %v1172
        %v1175 = vcvt.s32.f32 %v1168
        %v1176 = vmul.f32 %v1175, %v1173
        %v1177 = vxor.u32 %v1176, 2147483648
        %v1178 = vsel %vm1095, %v1177, %v1176
        %v1179 = vsub.s32 4, %v1155
        %v1180 = vsel %vm1095, %v1179, %v1155
        %v1181 = vsel %vm1094, %v364, %v1178
        %v1182 = vsel %vm1094, 0, %v1180
        %v1183 = vcosq.f32.pop %v1181
        %v1184 = vsinq.f32.pop %v1181
        %vm1185 = vweird.f32 %v364
        %v1186 = vadd.s32 %v1182, 3
        %v1187 = vand.u32 %v1186, 3
        %vm1188 = vcmp.lt.s32.totalorder %v1187, 2
        %vm1189 = vcmp.eq.s32.totalorder %v1187, 0
        %v1190 = vxor.u32 %v1184, 2147483648
        %v1191 = vsel %vm1189, %v1183, %v1190
        %vm1192 = vcmp.eq.s32.totalorder %v1187, 2
        %v1193 = vxor.u32 %v1183, 2147483648
        %v1194 = vsel %vm1192, %v1193, %v1184
        %v1195 = vsel %vm1188, %v1191, %v1194
        %v1196 = vsel %vm1185, nan, %v1195
        %1197 = vst [vmem:[%s247] sm:$0xff] %v468
        %1198 = vst [vmem:[%s247 + $0x8] sm:$0xff] %v572
        %1199 = vst [vmem:[%s247 + $0x20] sm:$0xff] %v676
        %1200 = vst [vmem:[%s247 + $0x28] sm:$0xff] %v780
        %1201 = vst [vmem:[%s247 + $0x40] sm:$0xff] %v884
        %1202 = vst [vmem:[%s247 + $0x48] sm:$0xff] %v988
        %1203 = vst [vmem:[%s247 + $0x60] sm:$0xff] %v1092
        %1204 = vst [vmem:[%s247 + $0x68] sm:$0xff] %v1196
        %v1205 = vand.u32 2147483647, %v357
        %vm1206 = vcmp.le.f32.partialorder %v1205, 0.7853982
        %vm1207 = vcmp.lt.s32.totalorder %v357, 0
        %v1208 = vand.u32 %v357, 2139095040
        %v1209 = vshrl.u32 %v1208, 23
        %v1210 = vsub.s32 %v1209, 127
        %v1211 = vand.u32 2147483647, %v357
        %v1212 = vand.u32 %v1211, 8388607
        %v1213 = vor.u32 %v1212, 8388608
        %v1214 = vsub.s32 0, %v1213
        %v1215 = vadd.s32 %v1210, 1
        %vm1216 = vcmp.gt.s32.totalorder %v1215, 0
        %v1217 = vsel %vm1216, %v1215, 0
        %v1218 = vshrl.u32 %v1217, 5
        %v1219 = vand.u32 %v1217, 31
        %v1220 = vsub.s32 32, %v1219
        %v1221 = vshrl.u32 683565275, %v1220
        %v1222 = vshll.u32 683565275, %v1219
        %v1223 = vshrl.u32 2475754826, %v1220
        %v1224 = vor.u32 %v1222, %v1223
        %v1225 = vshll.u32 2475754826, %v1219
        %v1226 = vshrl.u32 2131351028, %v1220
        %v1227 = vor.u32 %v1225, %v1226
        %v1228 = vshll.u32 2131351028, %v1219
        %v1229 = vshrl.u32 2102212464, %v1220
        %v1230 = vor.u32 %v1228, %v1229
        %v1231 = vshll.u32 2102212464, %v1219
        %v1232 = vshrl.u32 920167782, %v1220
        %v1233 = vor.u32 %v1231, %v1232
        %v1234 = vshll.u32 920167782, %v1219
        %v1235 = vshrl.u32 1326507024, %v1220
        %v1236 = vor.u32 %v1234, %v1235
        %vm1237 = vcmp.lt.s32.totalorder %v1218, 1
        %vm1238 = vcmp.lt.s32.totalorder %v1218, 2
        %vm1239 = vcmp.lt.s32.totalorder %v1218, 3
        %vm1240 = vcmp.lt.s32.totalorder %v1218, 4
        %v1241 = vsel %vm1237, %v1221, %v1224
        %v1242 = vsel %vm1240, %v1230, 2102212464
        %v1243 = vsel %vm1239, %v1227, %v1242
        %v1244 = vsel %vm1238, %v1241, %v1243
        %v1245 = vsel %vm1237, %v1224, %v1227
        %v1246 = vsel %vm1240, %v1233, 920167782
        %v1247 = vsel %vm1239, %v1230, %v1246
        %v1248 = vsel %vm1238, %v1245, %v1247
        %v1249 = vsel %vm1237, %v1227, %v1230
        %v1250 = vsel %vm1240, %v1236, 1326507024
        %v1251 = vsel %vm1239, %v1233, %v1250
        %v1252 = vsel %vm1238, %v1249, %v1251
        %v1253 = vshll.u32 %v1213, 8
        %v1254 = vmul.u32.u64.compose %v1253, %v1252
        %v1255 = vextract.low.u32 %v1254
        %v1256 = vextract.high.u32 %v1254
        %v1257 = vmul.u32.u64.compose %v1253, %v1248
        %v1258 = vextract.low.u32 %v1257
        %v1259 = vextract.high.u32 %v1257
        %v1260 = vmul.u32 %v1253, %v1244
        %v1261 = vadd.s32 %v1256, %v1258
        %vm1262 = vc.u32 %v1256, %v1258
        %v1263 = vadd.s32 %v1259, 1
        %v1264 = vsel %vm1262, %v1263, %v1259
        %v1265 = vadd.s32 %v1260, %v1264
        %v1266 = vadd.s32 %v1265, 536870912
        %v1267 = vshrl.u32 %v1266, 30
        %v1268 = vshll.u32 %v1267, 30
        %v1269 = vsub.s32 %v1265, %v1268
        %vm1270 = vcmp.lt.s32.totalorder %v1269, 0
        %v1271 = vsub.s32 0, %v1269
        %v1272 = vsel %vm1270, %v1271, %v1269
        %v1273 = vclz %v1272
        %v1274 = vsub.s32 %v1273, 2
        %vm1275 = vcmp.gt.s32.totalorder 0, %v1274
        %v1276 = vsel %vm1275, 0, %v1274
        %v1277 = vsub.s32 32, %v1276
        %v1278 = vshll.u32 %v1269, %v1276
        %v1279 = vshrl.u32 %v1261, %v1277
        %v1280 = vor.u32 %v1278, %v1279
        %v1281 = vsub.s32 4294967266, %v1276
        %v1282 = vadd.s32 %v1281, 127
        %v1283 = vshll.u32 %v1282, 23
        %v1284 = vor.u32 4788187, %v1283
        %v1285 = vand.u32 2147483647, %v1284
        %v1287 = vcvt.s32.f32 %v1280
        %v1288 = vmul.f32 %v1287, %v1285
        %v1289 = vxor.u32 %v1288, 2147483648
        %v1290 = vsel %vm1207, %v1289, %v1288
        %v1291 = vsub.s32 4, %v1267
        %v1292 = vsel %vm1207, %v1291, %v1267
        %v1293 = vsel %vm1206, %v357, %v1290
        %v1294 = vsel %vm1206, 0, %v1292
        %v1295 = vcosq.f32.pop %v1293
        %v1296 = vsinq.f32.pop %v1293
        %vm1297 = vweird.f32 %v357
        %v1298 = vand.u32 %v1294, 3
        %vm1299 = vcmp.lt.s32.totalorder %v1298, 2
        %vm1300 = vcmp.eq.s32.totalorder %v1298, 0
        %v1301 = vxor.u32 %v1296, 2147483648
        %v1302 = vsel %vm1300, %v1295, %v1301
        %vm1303 = vcmp.eq.s32.totalorder %v1298, 2
        %v1304 = vxor.u32 %v1295, 2147483648
        %v1305 = vsel %vm1303, %v1304, %v1296
        %v1306 = vsel %vm1299, %v1302, %v1305
        %v1307 = vsel %vm1297, nan, %v1306
        %v1308 = vand.u32 2147483647, %v358
        %vm1309 = vcmp.le.f32.partialorder %v1308, 0.7853982
        %vm1310 = vcmp.lt.s32.totalorder %v358, 0
        %v1311 = vand.u32 %v358, 2139095040
        %v1312 = vshrl.u32 %v1311, 23
        %v1313 = vsub.s32 %v1312, 127
        %v1314 = vand.u32 2147483647, %v358
        %v1315 = vand.u32 %v1314, 8388607
        %v1316 = vor.u32 %v1315, 8388608
        %v1317 = vsub.s32 0, %v1316
        %v1318 = vadd.s32 %v1313, 1
        %vm1319 = vcmp.gt.s32.totalorder %v1318, 0
        %v1320 = vsel %vm1319, %v1318, 0
        %v1321 = vshrl.u32 %v1320, 5
        %v1322 = vand.u32 %v1320, 31
        %v1323 = vsub.s32 32, %v1322
        %v1324 = vshrl.u32 683565275, %v1323
        %v1325 = vshll.u32 683565275, %v1322
        %v1326 = vshrl.u32 2475754826, %v1323
        %v1327 = vor.u32 %v1325, %v1326
        %v1328 = vshll.u32 2475754826, %v1322
        %v1329 = vshrl.u32 2131351028, %v1323
        %v1330 = vor.u32 %v1328, %v1329
        %v1331 = vshll.u32 2131351028, %v1322
        %v1332 = vshrl.u32 2102212464, %v1323
        %v1333 = vor.u32 %v1331, %v1332
        %v1334 = vshll.u32 2102212464, %v1322
        %v1335 = vshrl.u32 920167782, %v1323
        %v1336 = vor.u32 %v1334, %v1335
        %v1337 = vshll.u32 920167782, %v1322
        %v1338 = vshrl.u32 1326507024, %v1323
        %v1339 = vor.u32 %v1337, %v1338
        %vm1340 = vcmp.lt.s32.totalorder %v1321, 1
        %vm1341 = vcmp.lt.s32.totalorder %v1321, 2
        %vm1342 = vcmp.lt.s32.totalorder %v1321, 3
        %vm1343 = vcmp.lt.s32.totalorder %v1321, 4
        %v1344 = vsel %vm1340, %v1324, %v1327
        %v1345 = vsel %vm1343, %v1333, 2102212464
        %v1346 = vsel %vm1342, %v1330, %v1345
        %v1347 = vsel %vm1341, %v1344, %v1346
        %v1348 = vsel %vm1340, %v1327, %v1330
        %v1349 = vsel %vm1343, %v1336, 920167782
        %v1350 = vsel %vm1342, %v1333, %v1349
        %v1351 = vsel %vm1341, %v1348, %v1350
        %v1352 = vsel %vm1340, %v1330, %v1333
        %v1353 = vsel %vm1343, %v1339, 1326507024
        %v1354 = vsel %vm1342, %v1336, %v1353
        %v1355 = vsel %vm1341, %v1352, %v1354
        %v1356 = vshll.u32 %v1316, 8
        %v1357 = vmul.u32.u64.compose %v1356, %v1355
        %v1358 = vextract.low.u32 %v1357
        %v1359 = vextract.high.u32 %v1357
        %v1360 = vmul.u32.u64.compose %v1356, %v1351
        %v1361 = vextract.low.u32 %v1360
        %v1362 = vextract.high.u32 %v1360
        %v1363 = vmul.u32 %v1356, %v1347
        %v1364 = vadd.s32 %v1359, %v1361
        %vm1365 = vc.u32 %v1359, %v1361
        %v1366 = vadd.s32 %v1362, 1
        %v1367 = vsel %vm1365, %v1366, %v1362
        %v1368 = vadd.s32 %v1363, %v1367
        %v1369 = vadd.s32 %v1368, 536870912
        %v1370 = vshrl.u32 %v1369, 30
        %v1371 = vshll.u32 %v1370, 30
        %v1372 = vsub.s32 %v1368, %v1371
        %vm1373 = vcmp.lt.s32.totalorder %v1372, 0
        %v1374 = vsub.s32 0, %v1372
        %v1375 = vsel %vm1373, %v1374, %v1372
        %v1376 = vclz %v1375
        %v1377 = vsub.s32 %v1376, 2
        %vm1378 = vcmp.gt.s32.totalorder 0, %v1377
        %v1379 = vsel %vm1378, 0, %v1377
        %v1380 = vsub.s32 32, %v1379
        %v1381 = vshll.u32 %v1372, %v1379
        %v1382 = vshrl.u32 %v1364, %v1380
        %v1383 = vor.u32 %v1381, %v1382
        %v1384 = vsub.s32 4294967266, %v1379
        %v1385 = vadd.s32 %v1384, 127
        %v1386 = vshll.u32 %v1385, 23
        %v1387 = vor.u32 4788187, %v1386
        %v1388 = vand.u32 2147483647, %v1387
        %v1390 = vcvt.s32.f32 %v1383
        %v1391 = vmul.f32 %v1390, %v1388
        %v1392 = vxor.u32 %v1391, 2147483648
        %v1393 = vsel %vm1310, %v1392, %v1391
        %v1394 = vsub.s32 4, %v1370
        %v1395 = vsel %vm1310, %v1394, %v1370
        %v1396 = vsel %vm1309, %v358, %v1393
        %v1397 = vsel %vm1309, 0, %v1395
        %v1398 = vcosq.f32.pop %v1396
        %v1399 = vsinq.f32.pop %v1396
        %vm1400 = vweird.f32 %v358
        %v1401 = vand.u32 %v1397, 3
        %vm1402 = vcmp.lt.s32.totalorder %v1401, 2
        %vm1403 = vcmp.eq.s32.totalorder %v1401, 0
        %v1404 = vxor.u32 %v1399, 2147483648
        %v1405 = vsel %vm1403, %v1398, %v1404
        %vm1406 = vcmp.eq.s32.totalorder %v1401, 2
        %v1407 = vxor.u32 %v1398, 2147483648
        %v1408 = vsel %vm1406, %v1407, %v1399
        %v1409 = vsel %vm1402, %v1405, %v1408
        %v1410 = vsel %vm1400, nan, %v1409
        %v1411 = vand.u32 2147483647, %v359
        %vm1412 = vcmp.le.f32.partialorder %v1411, 0.7853982
        %vm1413 = vcmp.lt.s32.totalorder %v359, 0
        %v1414 = vand.u32 %v359, 2139095040
        %v1415 = vshrl.u32 %v1414, 23
        %v1416 = vsub.s32 %v1415, 127
        %v1417 = vand.u32 2147483647, %v359
        %v1418 = vand.u32 %v1417, 8388607
        %v1419 = vor.u32 %v1418, 8388608
        %v1420 = vsub.s32 0, %v1419
        %v1421 = vadd.s32 %v1416, 1
        %vm1422 = vcmp.gt.s32.totalorder %v1421, 0
        %v1423 = vsel %vm1422, %v1421, 0
        %v1424 = vshrl.u32 %v1423, 5
        %v1425 = vand.u32 %v1423, 31
        %v1426 = vsub.s32 32, %v1425
        %v1427 = vshrl.u32 683565275, %v1426
        %v1428 = vshll.u32 683565275, %v1425
        %v1429 = vshrl.u32 2475754826, %v1426
        %v1430 = vor.u32 %v1428, %v1429
        %v1431 = vshll.u32 2475754826, %v1425
        %v1432 = vshrl.u32 2131351028, %v1426
        %v1433 = vor.u32 %v1431, %v1432
        %v1434 = vshll.u32 2131351028, %v1425
        %v1435 = vshrl.u32 2102212464, %v1426
        %v1436 = vor.u32 %v1434, %v1435
        %v1437 = vshll.u32 2102212464, %v1425
        %v1438 = vshrl.u32 920167782, %v1426
        %v1439 = vor.u32 %v1437, %v1438
        %v1440 = vshll.u32 920167782, %v1425
        %v1441 = vshrl.u32 1326507024, %v1426
        %v1442 = vor.u32 %v1440, %v1441
        %vm1443 = vcmp.lt.s32.totalorder %v1424, 1
        %vm1444 = vcmp.lt.s32.totalorder %v1424, 2
        %vm1445 = vcmp.lt.s32.totalorder %v1424, 3
        %vm1446 = vcmp.lt.s32.totalorder %v1424, 4
        %v1447 = vsel %vm1443, %v1427, %v1430
        %v1448 = vsel %vm1446, %v1436, 2102212464
        %v1449 = vsel %vm1445, %v1433, %v1448
        %v1450 = vsel %vm1444, %v1447, %v1449
        %v1451 = vsel %vm1443, %v1430, %v1433
        %v1452 = vsel %vm1446, %v1439, 920167782
        %v1453 = vsel %vm1445, %v1436, %v1452
        %v1454 = vsel %vm1444, %v1451, %v1453
        %v1455 = vsel %vm1443, %v1433, %v1436
        %v1456 = vsel %vm1446, %v1442, 1326507024
        %v1457 = vsel %vm1445, %v1439, %v1456
        %v1458 = vsel %vm1444, %v1455, %v1457
        %v1459 = vshll.u32 %v1419, 8
        %v1460 = vmul.u32.u64.compose %v1459, %v1458
        %v1461 = vextract.low.u32 %v1460
        %v1462 = vextract.high.u32 %v1460
        %v1463 = vmul.u32.u64.compose %v1459, %v1454
        %v1464 = vextract.low.u32 %v1463
        %v1465 = vextract.high.u32 %v1463
        %v1466 = vmul.u32 %v1459, %v1450
        %v1467 = vadd.s32 %v1462, %v1464
        %vm1468 = vc.u32 %v1462, %v1464
        %v1469 = vadd.s32 %v1465, 1
        %v1470 = vsel %vm1468, %v1469, %v1465
        %v1471 = vadd.s32 %v1466, %v1470
        %v1472 = vadd.s32 %v1471, 536870912
        %v1473 = vshrl.u32 %v1472, 30
        %v1474 = vshll.u32 %v1473, 30
        %v1475 = vsub.s32 %v1471, %v1474
        %vm1476 = vcmp.lt.s32.totalorder %v1475, 0
        %v1477 = vsub.s32 0, %v1475
        %v1478 = vsel %vm1476, %v1477, %v1475
        %v1479 = vclz %v1478
        %v1480 = vsub.s32 %v1479, 2
        %vm1481 = vcmp.gt.s32.totalorder 0, %v1480
        %v1482 = vsel %vm1481, 0, %v1480
        %v1483 = vsub.s32 32, %v1482
        %v1484 = vshll.u32 %v1475, %v1482
        %v1485 = vshrl.u32 %v1467, %v1483
        %v1486 = vor.u32 %v1484, %v1485
        %v1487 = vsub.s32 4294967266, %v1482
        %v1488 = vadd.s32 %v1487, 127
        %v1489 = vshll.u32 %v1488, 23
        %v1490 = vor.u32 4788187, %v1489
        %v1491 = vand.u32 2147483647, %v1490
        %v1493 = vcvt.s32.f32 %v1486
        %v1494 = vmul.f32 %v1493, %v1491
        %v1495 = vxor.u32 %v1494, 2147483648
        %v1496 = vsel %vm1413, %v1495, %v1494
        %v1497 = vsub.s32 4, %v1473
        %v1498 = vsel %vm1413, %v1497, %v1473
        %v1499 = vsel %vm1412, %v359, %v1496
        %v1500 = vsel %vm1412, 0, %v1498
        %v1501 = vcosq.f32.pop %v1499
        %v1502 = vsinq.f32.pop %v1499
        %vm1503 = vweird.f32 %v359
        %v1504 = vand.u32 %v1500, 3
        %vm1505 = vcmp.lt.s32.totalorder %v1504, 2
        %vm1506 = vcmp.eq.s32.totalorder %v1504, 0
        %v1507 = vxor.u32 %v1502, 2147483648
        %v1508 = vsel %vm1506, %v1501, %v1507
        %vm1509 = vcmp.eq.s32.totalorder %v1504, 2
        %v1510 = vxor.u32 %v1501, 2147483648
        %v1511 = vsel %vm1509, %v1510, %v1502
        %v1512 = vsel %vm1505, %v1508, %v1511
        %v1513 = vsel %vm1503, nan, %v1512
        %v1514 = vand.u32 2147483647, %v360
        %vm1515 = vcmp.le.f32.partialorder %v1514, 0.7853982
        %vm1516 = vcmp.lt.s32.totalorder %v360, 0
        %v1517 = vand.u32 %v360, 2139095040
        %v1518 = vshrl.u32 %v1517, 23
        %v1519 = vsub.s32 %v1518, 127
        %v1520 = vand.u32 2147483647, %v360
        %v1521 = vand.u32 %v1520, 8388607
        %v1522 = vor.u32 %v1521, 8388608
        %v1523 = vsub.s32 0, %v1522
        %v1524 = vadd.s32 %v1519, 1
        %vm1525 = vcmp.gt.s32.totalorder %v1524, 0
        %v1526 = vsel %vm1525, %v1524, 0
        %v1527 = vshrl.u32 %v1526, 5
        %v1528 = vand.u32 %v1526, 31
        %v1529 = vsub.s32 32, %v1528
        %v1530 = vshrl.u32 683565275, %v1529
        %v1531 = vshll.u32 683565275, %v1528
        %v1532 = vshrl.u32 2475754826, %v1529
        %v1533 = vor.u32 %v1531, %v1532
        %v1534 = vshll.u32 2475754826, %v1528
        %v1535 = vshrl.u32 2131351028, %v1529
        %v1536 = vor.u32 %v1534, %v1535
        %v1537 = vshll.u32 2131351028, %v1528
        %v1538 = vshrl.u32 2102212464, %v1529
        %v1539 = vor.u32 %v1537, %v1538
        %v1540 = vshll.u32 2102212464, %v1528
        %v1541 = vshrl.u32 920167782, %v1529
        %v1542 = vor.u32 %v1540, %v1541
        %v1543 = vshll.u32 920167782, %v1528
        %v1544 = vshrl.u32 1326507024, %v1529
        %v1545 = vor.u32 %v1543, %v1544
        %vm1546 = vcmp.lt.s32.totalorder %v1527, 1
        %vm1547 = vcmp.lt.s32.totalorder %v1527, 2
        %vm1548 = vcmp.lt.s32.totalorder %v1527, 3
        %vm1549 = vcmp.lt.s32.totalorder %v1527, 4
        %v1550 = vsel %vm1546, %v1530, %v1533
        %v1551 = vsel %vm1549, %v1539, 2102212464
        %v1552 = vsel %vm1548, %v1536, %v1551
        %v1553 = vsel %vm1547, %v1550, %v1552
        %v1554 = vsel %vm1546, %v1533, %v1536
        %v1555 = vsel %vm1549, %v1542, 920167782
        %v1556 = vsel %vm1548, %v1539, %v1555
        %v1557 = vsel %vm1547, %v1554, %v1556
        %v1558 = vsel %vm1546, %v1536, %v1539
        %v1559 = vsel %vm1549, %v1545, 1326507024
        %v1560 = vsel %vm1548, %v1542, %v1559
        %v1561 = vsel %vm1547, %v1558, %v1560
        %v1562 = vshll.u32 %v1522, 8
        %v1563 = vmul.u32.u64.compose %v1562, %v1561
        %v1564 = vextract.low.u32 %v1563
        %v1565 = vextract.high.u32 %v1563
        %v1566 = vmul.u32.u64.compose %v1562, %v1557
        %v1567 = vextract.low.u32 %v1566
        %v1568 = vextract.high.u32 %v1566
        %v1569 = vmul.u32 %v1562, %v1553
        %v1570 = vadd.s32 %v1565, %v1567
        %vm1571 = vc.u32 %v1565, %v1567
        %v1572 = vadd.s32 %v1568, 1
        %v1573 = vsel %vm1571, %v1572, %v1568
        %v1574 = vadd.s32 %v1569, %v1573
        %v1575 = vadd.s32 %v1574, 536870912
        %v1576 = vshrl.u32 %v1575, 30
        %v1577 = vshll.u32 %v1576, 30
        %v1578 = vsub.s32 %v1574, %v1577
        %vm1579 = vcmp.lt.s32.totalorder %v1578, 0
        %v1580 = vsub.s32 0, %v1578
        %v1581 = vsel %vm1579, %v1580, %v1578
        %v1582 = vclz %v1581
        %v1583 = vsub.s32 %v1582, 2
        %vm1584 = vcmp.gt.s32.totalorder 0, %v1583
        %v1585 = vsel %vm1584, 0, %v1583
        %v1586 = vsub.s32 32, %v1585
        %v1587 = vshll.u32 %v1578, %v1585
        %v1588 = vshrl.u32 %v1570, %v1586
        %v1589 = vor.u32 %v1587, %v1588
        %v1590 = vsub.s32 4294967266, %v1585
        %v1591 = vadd.s32 %v1590, 127
        %v1592 = vshll.u32 %v1591, 23
        %v1593 = vor.u32 4788187, %v1592
        %v1594 = vand.u32 2147483647, %v1593
        %v1596 = vcvt.s32.f32 %v1589
        %v1597 = vmul.f32 %v1596, %v1594
        %v1598 = vxor.u32 %v1597, 2147483648
        %v1599 = vsel %vm1516, %v1598, %v1597
        %v1600 = vsub.s32 4, %v1576
        %v1601 = vsel %vm1516, %v1600, %v1576
        %v1602 = vsel %vm1515, %v360, %v1599
        %v1603 = vsel %vm1515, 0, %v1601
        %v1604 = vcosq.f32.pop %v1602
        %v1605 = vsinq.f32.pop %v1602
        %vm1606 = vweird.f32 %v360
        %v1607 = vand.u32 %v1603, 3
        %vm1608 = vcmp.lt.s32.totalorder %v1607, 2
        %vm1609 = vcmp.eq.s32.totalorder %v1607, 0
        %v1610 = vxor.u32 %v1605, 2147483648
        %v1611 = vsel %vm1609, %v1604, %v1610
        %vm1612 = vcmp.eq.s32.totalorder %v1607, 2
        %v1613 = vxor.u32 %v1604, 2147483648
        %v1614 = vsel %vm1612, %v1613, %v1605
        %v1615 = vsel %vm1608, %v1611, %v1614
        %v1616 = vsel %vm1606, nan, %v1615
        %v1617 = vand.u32 2147483647, %v361
        %vm1618 = vcmp.le.f32.partialorder %v1617, 0.7853982
        %vm1619 = vcmp.lt.s32.totalorder %v361, 0
        %v1620 = vand.u32 %v361, 2139095040
        %v1621 = vshrl.u32 %v1620, 23
        %v1622 = vsub.s32 %v1621, 127
        %v1623 = vand.u32 2147483647, %v361
        %v1624 = vand.u32 %v1623, 8388607
        %v1625 = vor.u32 %v1624, 8388608
        %v1626 = vsub.s32 0, %v1625
        %v1627 = vadd.s32 %v1622, 1
        %vm1628 = vcmp.gt.s32.totalorder %v1627, 0
        %v1629 = vsel %vm1628, %v1627, 0
        %v1630 = vshrl.u32 %v1629, 5
        %v1631 = vand.u32 %v1629, 31
        %v1632 = vsub.s32 32, %v1631
        %v1633 = vshrl.u32 683565275, %v1632
        %v1634 = vshll.u32 683565275, %v1631
        %v1635 = vshrl.u32 2475754826, %v1632
        %v1636 = vor.u32 %v1634, %v1635
        %v1637 = vshll.u32 2475754826, %v1631
        %v1638 = vshrl.u32 2131351028, %v1632
        %v1639 = vor.u32 %v1637, %v1638
        %v1640 = vshll.u32 2131351028, %v1631
        %v1641 = vshrl.u32 2102212464, %v1632
        %v1642 = vor.u32 %v1640, %v1641
        %v1643 = vshll.u32 2102212464, %v1631
        %v1644 = vshrl.u32 920167782, %v1632
        %v1645 = vor.u32 %v1643, %v1644
        %v1646 = vshll.u32 920167782, %v1631
        %v1647 = vshrl.u32 1326507024, %v1632
        %v1648 = vor.u32 %v1646, %v1647
        %vm1649 = vcmp.lt.s32.totalorder %v1630, 1
        %vm1650 = vcmp.lt.s32.totalorder %v1630, 2
        %vm1651 = vcmp.lt.s32.totalorder %v1630, 3
        %vm1652 = vcmp.lt.s32.totalorder %v1630, 4
        %v1653 = vsel %vm1649, %v1633, %v1636
        %v1654 = vsel %vm1652, %v1642, 2102212464
        %v1655 = vsel %vm1651, %v1639, %v1654
        %v1656 = vsel %vm1650, %v1653, %v1655
        %v1657 = vsel %vm1649, %v1636, %v1639
        %v1658 = vsel %vm1652, %v1645, 920167782
        %v1659 = vsel %vm1651, %v1642, %v1658
        %v1660 = vsel %vm1650, %v1657, %v1659
        %v1661 = vsel %vm1649, %v1639, %v1642
        %v1662 = vsel %vm1652, %v1648, 1326507024
        %v1663 = vsel %vm1651, %v1645, %v1662
        %v1664 = vsel %vm1650, %v1661, %v1663
        %v1665 = vshll.u32 %v1625, 8
        %v1666 = vmul.u32.u64.compose %v1665, %v1664
        %v1667 = vextract.low.u32 %v1666
        %v1668 = vextract.high.u32 %v1666
        %v1669 = vmul.u32.u64.compose %v1665, %v1660
        %v1670 = vextract.low.u32 %v1669
        %v1671 = vextract.high.u32 %v1669
        %v1672 = vmul.u32 %v1665, %v1656
        %v1673 = vadd.s32 %v1668, %v1670
        %vm1674 = vc.u32 %v1668, %v1670
        %v1675 = vadd.s32 %v1671, 1
        %v1676 = vsel %vm1674, %v1675, %v1671
        %v1677 = vadd.s32 %v1672, %v1676
        %v1678 = vadd.s32 %v1677, 536870912
        %v1679 = vshrl.u32 %v1678, 30
        %v1680 = vshll.u32 %v1679, 30
        %v1681 = vsub.s32 %v1677, %v1680
        %vm1682 = vcmp.lt.s32.totalorder %v1681, 0
        %v1683 = vsub.s32 0, %v1681
        %v1684 = vsel %vm1682, %v1683, %v1681
        %v1685 = vclz %v1684
        %v1686 = vsub.s32 %v1685, 2
        %vm1687 = vcmp.gt.s32.totalorder 0, %v1686
        %v1688 = vsel %vm1687, 0, %v1686
        %v1689 = vsub.s32 32, %v1688
        %v1690 = vshll.u32 %v1681, %v1688
        %v1691 = vshrl.u32 %v1673, %v1689
        %v1692 = vor.u32 %v1690, %v1691
        %v1693 = vsub.s32 4294967266, %v1688
        %v1694 = vadd.s32 %v1693, 127
        %v1695 = vshll.u32 %v1694, 23
        %v1696 = vor.u32 4788187, %v1695
        %v1697 = vand.u32 2147483647, %v1696
        %v1699 = vcvt.s32.f32 %v1692
        %v1700 = vmul.f32 %v1699, %v1697
        %v1701 = vxor.u32 %v1700, 2147483648
        %v1702 = vsel %vm1619, %v1701, %v1700
        %v1703 = vsub.s32 4, %v1679
        %v1704 = vsel %vm1619, %v1703, %v1679
        %v1705 = vsel %vm1618, %v361, %v1702
        %v1706 = vsel %vm1618, 0, %v1704
        %v1707 = vcosq.f32.pop %v1705
        %v1708 = vsinq.f32.pop %v1705
        %vm1709 = vweird.f32 %v361
        %v1710 = vand.u32 %v1706, 3
        %vm1711 = vcmp.lt.s32.totalorder %v1710, 2
        %vm1712 = vcmp.eq.s32.totalorder %v1710, 0
        %v1713 = vxor.u32 %v1708, 2147483648
        %v1714 = vsel %vm1712, %v1707, %v1713
        %vm1715 = vcmp.eq.s32.totalorder %v1710, 2
        %v1716 = vxor.u32 %v1707, 2147483648
        %v1717 = vsel %vm1715, %v1716, %v1708
        %v1718 = vsel %vm1711, %v1714, %v1717
        %v1719 = vsel %vm1709, nan, %v1718
        %v1720 = vand.u32 2147483647, %v362
        %vm1721 = vcmp.le.f32.partialorder %v1720, 0.7853982
        %vm1722 = vcmp.lt.s32.totalorder %v362, 0
        %v1723 = vand.u32 %v362, 2139095040
        %v1724 = vshrl.u32 %v1723, 23
        %v1725 = vsub.s32 %v1724, 127
        %v1726 = vand.u32 2147483647, %v362
        %v1727 = vand.u32 %v1726, 8388607
        %v1728 = vor.u32 %v1727, 8388608
        %v1729 = vsub.s32 0, %v1728
        %v1730 = vadd.s32 %v1725, 1
        %vm1731 = vcmp.gt.s32.totalorder %v1730, 0
        %v1732 = vsel %vm1731, %v1730, 0
        %v1733 = vshrl.u32 %v1732, 5
        %v1734 = vand.u32 %v1732, 31
        %v1735 = vsub.s32 32, %v1734
        %v1736 = vshrl.u32 683565275, %v1735
        %v1737 = vshll.u32 683565275, %v1734
        %v1738 = vshrl.u32 2475754826, %v1735
        %v1739 = vor.u32 %v1737, %v1738
        %v1740 = vshll.u32 2475754826, %v1734
        %v1741 = vshrl.u32 2131351028, %v1735
        %v1742 = vor.u32 %v1740, %v1741
        %v1743 = vshll.u32 2131351028, %v1734
        %v1744 = vshrl.u32 2102212464, %v1735
        %v1745 = vor.u32 %v1743, %v1744
        %v1746 = vshll.u32 2102212464, %v1734
        %v1747 = vshrl.u32 920167782, %v1735
        %v1748 = vor.u32 %v1746, %v1747
        %v1749 = vshll.u32 920167782, %v1734
        %v1750 = vshrl.u32 1326507024, %v1735
        %v1751 = vor.u32 %v1749, %v1750
        %vm1752 = vcmp.lt.s32.totalorder %v1733, 1
        %vm1753 = vcmp.lt.s32.totalorder %v1733, 2
        %vm1754 = vcmp.lt.s32.totalorder %v1733, 3
        %vm1755 = vcmp.lt.s32.totalorder %v1733, 4
        %v1756 = vsel %vm1752, %v1736, %v1739
        %v1757 = vsel %vm1755, %v1745, 2102212464
        %v1758 = vsel %vm1754, %v1742, %v1757
        %v1759 = vsel %vm1753, %v1756, %v1758
        %v1760 = vsel %vm1752, %v1739, %v1742
        %v1761 = vsel %vm1755, %v1748, 920167782
        %v1762 = vsel %vm1754, %v1745, %v1761
        %v1763 = vsel %vm1753, %v1760, %v1762
        %v1764 = vsel %vm1752, %v1742, %v1745
        %v1765 = vsel %vm1755, %v1751, 1326507024
        %v1766 = vsel %vm1754, %v1748, %v1765
        %v1767 = vsel %vm1753, %v1764, %v1766
        %v1768 = vshll.u32 %v1728, 8
        %v1769 = vmul.u32.u64.compose %v1768, %v1767
        %v1770 = vextract.low.u32 %v1769
        %v1771 = vextract.high.u32 %v1769
        %v1772 = vmul.u32.u64.compose %v1768, %v1763
        %v1773 = vextract.low.u32 %v1772
        %v1774 = vextract.high.u32 %v1772
        %v1775 = vmul.u32 %v1768, %v1759
        %v1776 = vadd.s32 %v1771, %v1773
        %vm1777 = vc.u32 %v1771, %v1773
        %v1778 = vadd.s32 %v1774, 1
        %v1779 = vsel %vm1777, %v1778, %v1774
        %v1780 = vadd.s32 %v1775, %v1779
        %v1781 = vadd.s32 %v1780, 536870912
        %v1782 = vshrl.u32 %v1781, 30
        %v1783 = vshll.u32 %v1782, 30
        %v1784 = vsub.s32 %v1780, %v1783
        %vm1785 = vcmp.lt.s32.totalorder %v1784, 0
        %v1786 = vsub.s32 0, %v1784
        %v1787 = vsel %vm1785, %v1786, %v1784
        %v1788 = vclz %v1787
        %v1789 = vsub.s32 %v1788, 2
        %vm1790 = vcmp.gt.s32.totalorder 0, %v1789
        %v1791 = vsel %vm1790, 0, %v1789
        %v1792 = vsub.s32 32, %v1791
        %v1793 = vshll.u32 %v1784, %v1791
        %v1794 = vshrl.u32 %v1776, %v1792
        %v1795 = vor.u32 %v1793, %v1794
        %v1796 = vsub.s32 4294967266, %v1791
        %v1797 = vadd.s32 %v1796, 127
        %v1798 = vshll.u32 %v1797, 23
        %v1799 = vor.u32 4788187, %v1798
        %v1800 = vand.u32 2147483647, %v1799
        %v1802 = vcvt.s32.f32 %v1795
        %v1803 = vmul.f32 %v1802, %v1800
        %v1804 = vxor.u32 %v1803, 2147483648
        %v1805 = vsel %vm1722, %v1804, %v1803
        %v1806 = vsub.s32 4, %v1782
        %v1807 = vsel %vm1722, %v1806, %v1782
        %v1808 = vsel %vm1721, %v362, %v1805
        %v1809 = vsel %vm1721, 0, %v1807
        %v1810 = vcosq.f32.pop %v1808
        %v1811 = vsinq.f32.pop %v1808
        %vm1812 = vweird.f32 %v362
        %v1813 = vand.u32 %v1809, 3
        %vm1814 = vcmp.lt.s32.totalorder %v1813, 2
        %vm1815 = vcmp.eq.s32.totalorder %v1813, 0
        %v1816 = vxor.u32 %v1811, 2147483648
        %v1817 = vsel %vm1815, %v1810, %v1816
        %vm1818 = vcmp.eq.s32.totalorder %v1813, 2
        %v1819 = vxor.u32 %v1810, 2147483648
        %v1820 = vsel %vm1818, %v1819, %v1811
        %v1821 = vsel %vm1814, %v1817, %v1820
        %v1822 = vsel %vm1812, nan, %v1821
        %v1823 = vand.u32 2147483647, %v363
        %vm1824 = vcmp.le.f32.partialorder %v1823, 0.7853982
        %vm1825 = vcmp.lt.s32.totalorder %v363, 0
        %v1826 = vand.u32 %v363, 2139095040
        %v1827 = vshrl.u32 %v1826, 23
        %v1828 = vsub.s32 %v1827, 127
        %v1829 = vand.u32 2147483647, %v363
        %v1830 = vand.u32 %v1829, 8388607
        %v1831 = vor.u32 %v1830, 8388608
        %v1832 = vsub.s32 0, %v1831
        %v1833 = vadd.s32 %v1828, 1
        %vm1834 = vcmp.gt.s32.totalorder %v1833, 0
        %v1835 = vsel %vm1834, %v1833, 0
        %v1836 = vshrl.u32 %v1835, 5
        %v1837 = vand.u32 %v1835, 31
        %v1838 = vsub.s32 32, %v1837
        %v1839 = vshrl.u32 683565275, %v1838
        %v1840 = vshll.u32 683565275, %v1837
        %v1841 = vshrl.u32 2475754826, %v1838
        %v1842 = vor.u32 %v1840, %v1841
        %v1843 = vshll.u32 2475754826, %v1837
        %v1844 = vshrl.u32 2131351028, %v1838
        %v1845 = vor.u32 %v1843, %v1844
        %v1846 = vshll.u32 2131351028, %v1837
        %v1847 = vshrl.u32 2102212464, %v1838
        %v1848 = vor.u32 %v1846, %v1847
        %v1849 = vshll.u32 2102212464, %v1837
        %v1850 = vshrl.u32 920167782, %v1838
        %v1851 = vor.u32 %v1849, %v1850
        %v1852 = vshll.u32 920167782, %v1837
        %v1853 = vshrl.u32 1326507024, %v1838
        %v1854 = vor.u32 %v1852, %v1853
        %vm1855 = vcmp.lt.s32.totalorder %v1836, 1
        %vm1856 = vcmp.lt.s32.totalorder %v1836, 2
        %vm1857 = vcmp.lt.s32.totalorder %v1836, 3
        %vm1858 = vcmp.lt.s32.totalorder %v1836, 4
        %v1859 = vsel %vm1855, %v1839, %v1842
        %v1860 = vsel %vm1858, %v1848, 2102212464
        %v1861 = vsel %vm1857, %v1845, %v1860
        %v1862 = vsel %vm1856, %v1859, %v1861
        %v1863 = vsel %vm1855, %v1842, %v1845
        %v1864 = vsel %vm1858, %v1851, 920167782
        %v1865 = vsel %vm1857, %v1848, %v1864
        %v1866 = vsel %vm1856, %v1863, %v1865
        %v1867 = vsel %vm1855, %v1845, %v1848
        %v1868 = vsel %vm1858, %v1854, 1326507024
        %v1869 = vsel %vm1857, %v1851, %v1868
        %v1870 = vsel %vm1856, %v1867, %v1869
        %v1871 = vshll.u32 %v1831, 8
        %v1872 = vmul.u32.u64.compose %v1871, %v1870
        %v1873 = vextract.low.u32 %v1872
        %v1874 = vextract.high.u32 %v1872
        %v1875 = vmul.u32.u64.compose %v1871, %v1866
        %v1876 = vextract.low.u32 %v1875
        %v1877 = vextract.high.u32 %v1875
        %v1878 = vmul.u32 %v1871, %v1862
        %v1879 = vadd.s32 %v1874, %v1876
        %vm1880 = vc.u32 %v1874, %v1876
        %v1881 = vadd.s32 %v1877, 1
        %v1882 = vsel %vm1880, %v1881, %v1877
        %v1883 = vadd.s32 %v1878, %v1882
        %v1884 = vadd.s32 %v1883, 536870912
        %v1885 = vshrl.u32 %v1884, 30
        %v1886 = vshll.u32 %v1885, 30
        %v1887 = vsub.s32 %v1883, %v1886
        %vm1888 = vcmp.lt.s32.totalorder %v1887, 0
        %v1889 = vsub.s32 0, %v1887
        %v1890 = vsel %vm1888, %v1889, %v1887
        %v1891 = vclz %v1890
        %v1892 = vsub.s32 %v1891, 2
        %vm1893 = vcmp.gt.s32.totalorder 0, %v1892
        %v1894 = vsel %vm1893, 0, %v1892
        %v1895 = vsub.s32 32, %v1894
        %v1896 = vshll.u32 %v1887, %v1894
        %v1897 = vshrl.u32 %v1879, %v1895
        %v1898 = vor.u32 %v1896, %v1897
        %v1899 = vsub.s32 4294967266, %v1894
        %v1900 = vadd.s32 %v1899, 127
        %v1901 = vshll.u32 %v1900, 23
        %v1902 = vor.u32 4788187, %v1901
        %v1903 = vand.u32 2147483647, %v1902
        %v1905 = vcvt.s32.f32 %v1898
        %v1906 = vmul.f32 %v1905, %v1903
        %v1907 = vxor.u32 %v1906, 2147483648
        %v1908 = vsel %vm1825, %v1907, %v1906
        %v1909 = vsub.s32 4, %v1885
        %v1910 = vsel %vm1825, %v1909, %v1885
        %v1911 = vsel %vm1824, %v363, %v1908
        %v1912 = vsel %vm1824, 0, %v1910
        %v1913 = vcosq.f32.pop %v1911
        %v1914 = vsinq.f32.pop %v1911
        %vm1915 = vweird.f32 %v363
        %v1916 = vand.u32 %v1912, 3
        %vm1917 = vcmp.lt.s32.totalorder %v1916, 2
        %vm1918 = vcmp.eq.s32.totalorder %v1916, 0
        %v1919 = vxor.u32 %v1914, 2147483648
        %v1920 = vsel %vm1918, %v1913, %v1919
        %vm1921 = vcmp.eq.s32.totalorder %v1916, 2
        %v1922 = vxor.u32 %v1913, 2147483648
        %v1923 = vsel %vm1921, %v1922, %v1914
        %v1924 = vsel %vm1917, %v1920, %v1923
        %v1925 = vsel %vm1915, nan, %v1924
        %v1926 = vand.u32 2147483647, %v364
        %vm1927 = vcmp.le.f32.partialorder %v1926, 0.7853982
        %vm1928 = vcmp.lt.s32.totalorder %v364, 0
        %v1929 = vand.u32 %v364, 2139095040
        %v1930 = vshrl.u32 %v1929, 23
        %v1931 = vsub.s32 %v1930, 127
        %v1932 = vand.u32 2147483647, %v364
        %v1933 = vand.u32 %v1932, 8388607
        %v1934 = vor.u32 %v1933, 8388608
        %v1935 = vsub.s32 0, %v1934
        %v1936 = vadd.s32 %v1931, 1
        %vm1937 = vcmp.gt.s32.totalorder %v1936, 0
        %v1938 = vsel %vm1937, %v1936, 0
        %v1939 = vshrl.u32 %v1938, 5
        %v1940 = vand.u32 %v1938, 31
        %v1941 = vsub.s32 32, %v1940
        %v1942 = vshrl.u32 683565275, %v1941
        %v1943 = vshll.u32 683565275, %v1940
        %v1944 = vshrl.u32 2475754826, %v1941
        %v1945 = vor.u32 %v1943, %v1944
        %v1946 = vshll.u32 2475754826, %v1940
        %v1947 = vshrl.u32 2131351028, %v1941
        %v1948 = vor.u32 %v1946, %v1947
        %v1949 = vshll.u32 2131351028, %v1940
        %v1950 = vshrl.u32 2102212464, %v1941
        %v1951 = vor.u32 %v1949, %v1950
        %v1952 = vshll.u32 2102212464, %v1940
        %v1953 = vshrl.u32 920167782, %v1941
        %v1954 = vor.u32 %v1952, %v1953
        %v1955 = vshll.u32 920167782, %v1940
        %v1956 = vshrl.u32 1326507024, %v1941
        %v1957 = vor.u32 %v1955, %v1956
        %vm1958 = vcmp.lt.s32.totalorder %v1939, 1
        %vm1959 = vcmp.lt.s32.totalorder %v1939, 2
        %vm1960 = vcmp.lt.s32.totalorder %v1939, 3
        %vm1961 = vcmp.lt.s32.totalorder %v1939, 4
        %v1962 = vsel %vm1958, %v1942, %v1945
        %v1963 = vsel %vm1961, %v1951, 2102212464
        %v1964 = vsel %vm1960, %v1948, %v1963
        %v1965 = vsel %vm1959, %v1962, %v1964
        %v1966 = vsel %vm1958, %v1945, %v1948
        %v1967 = vsel %vm1961, %v1954, 920167782
        %v1968 = vsel %vm1960, %v1951, %v1967
        %v1969 = vsel %vm1959, %v1966, %v1968
        %v1970 = vsel %vm1958, %v1948, %v1951
        %v1971 = vsel %vm1961, %v1957, 1326507024
        %v1972 = vsel %vm1960, %v1954, %v1971
        %v1973 = vsel %vm1959, %v1970, %v1972
        %v1974 = vshll.u32 %v1934, 8
        %v1975 = vmul.u32.u64.compose %v1974, %v1973
        %v1976 = vextract.low.u32 %v1975
        %v1977 = vextract.high.u32 %v1975
        %v1978 = vmul.u32.u64.compose %v1974, %v1969
        %v1979 = vextract.low.u32 %v1978
        %v1980 = vextract.high.u32 %v1978
        %v1981 = vmul.u32 %v1974, %v1965
        %v1982 = vadd.s32 %v1977, %v1979
        %vm1983 = vc.u32 %v1977, %v1979
        %v1984 = vadd.s32 %v1980, 1
        %v1985 = vsel %vm1983, %v1984, %v1980
        %v1986 = vadd.s32 %v1981, %v1985
        %v1987 = vadd.s32 %v1986, 536870912
        %v1988 = vshrl.u32 %v1987, 30
        %v1989 = vshll.u32 %v1988, 30
        %v1990 = vsub.s32 %v1986, %v1989
        %vm1991 = vcmp.lt.s32.totalorder %v1990, 0
        %v1992 = vsub.s32 0, %v1990
        %v1993 = vsel %vm1991, %v1992, %v1990
        %v1994 = vclz %v1993
        %v1995 = vsub.s32 %v1994, 2
        %vm1996 = vcmp.gt.s32.totalorder 0, %v1995
        %v1997 = vsel %vm1996, 0, %v1995
        %v1998 = vsub.s32 32, %v1997
        %v1999 = vshll.u32 %v1990, %v1997
        %v2000 = vshrl.u32 %v1982, %v1998
        %v2001 = vor.u32 %v1999, %v2000
        %v2002 = vsub.s32 4294967266, %v1997
        %v2003 = vadd.s32 %v2002, 127
        %v2004 = vshll.u32 %v2003, 23
        %v2005 = vor.u32 4788187, %v2004
        %v2006 = vand.u32 2147483647, %v2005
        %v2008 = vcvt.s32.f32 %v2001
        %v2009 = vmul.f32 %v2008, %v2006
        %v2010 = vxor.u32 %v2009, 2147483648
        %v2011 = vsel %vm1928, %v2010, %v2009
        %v2012 = vsub.s32 4, %v1988
        %v2013 = vsel %vm1928, %v2012, %v1988
        %v2014 = vsel %vm1927, %v364, %v2011
        %v2015 = vsel %vm1927, 0, %v2013
        %v2016 = vcosq.f32.pop %v2014
        %v2017 = vsinq.f32.pop %v2014
        %vm2018 = vweird.f32 %v364
        %v2019 = vand.u32 %v2015, 3
        %vm2020 = vcmp.lt.s32.totalorder %v2019, 2
        %vm2021 = vcmp.eq.s32.totalorder %v2019, 0
        %v2022 = vxor.u32 %v2017, 2147483648
        %v2023 = vsel %vm2021, %v2016, %v2022
        %vm2024 = vcmp.eq.s32.totalorder %v2019, 2
        %v2025 = vxor.u32 %v2016, 2147483648
        %v2026 = vsel %vm2024, %v2025, %v2017
        %v2027 = vsel %vm2020, %v2023, %v2026
        %v2028 = vsel %vm2018, nan, %v2027
        %2029 = vst [vmem:[%s247 + $0x10] sm:$0xff] %v1307
        %2030 = vst [vmem:[%s247 + $0x18] sm:$0xff] %v1410
        %2031 = vst [vmem:[%s247 + $0x30] sm:$0xff] %v1513
        %2032 = vst [vmem:[%s247 + $0x38] sm:$0xff] %v1616
        %2033 = vst [vmem:[%s247 + $0x50] sm:$0xff] %v1719
        %2034 = vst [vmem:[%s247 + $0x58] sm:$0xff] %v1822
        %2035 = vst [vmem:[%s247 + $0x70] sm:$0xff] %v1925
        %2036 = vst [vmem:[%s247 + $0x78] sm:$0xff] %v2028
        %s2037 = sand.u32 %s144, 1
        %s2038 = scalar_lea.sflag [#allocation3], %s2037
        %s2039 = sand.u32 %s144, 1
        %s2040 = smul.addr %s2039, 128
        %s2041 = scalar_lea.vmem [#allocation2], %s2040
        // Predicated region
        $region37: #{tpu_custom_call.1} parent=35 // pred_check
          %p2042 = pneg %p154
        $region38: #{tpu_custom_call.1} parent=35 // pred_check_branch
          %2044 = sbr.rel (%p2042) target = $region40
        $region39: #{tpu_custom_call.1} parent=35 // pred_region
          %s2045 = smul.u32 4, %s23
          %s2047 = ssub.s32 2048, 2048
          %2048 = vsyncadd %s2038, %s2047
          %s2049 = smul.addr %s2045, 4
          %s2050 = smul.addr %s22, 16
          %s2051 = sadd.s32 %s2049, %s2050
          %s2052 = smul.addr %s2051, 128
          %s2053 = scalar_lea.hbm %s4, %s2052
          %s2054 = sshll.u32 %s2041, 4
          %s2055 = int_to_ptr.vmem [resolvable:$true] %s2054
          %2060 = dma.vmem_to_hbm [thread:$0]  %s2055, 2048, %s2053, %s2038, 512, 512, 32
        $region40: #{tpu_custom_call.1} parent=35 // pred_fallthru
          _
      $region36: #{tpu_custom_call.1} parent=5 // pred_fallthru
        _
      %p2061 = scmp.le.s32.totalorder 2, %s13
      // Predicated region
      $region41: #{tpu_custom_call.1} parent=5 // pred_check
        %p2062 = pneg %p2061
      $region42: #{tpu_custom_call.1} parent=5 // pred_check_branch
        %2064 = sbr.rel (%p2062) target = $region44
      $region43: #{tpu_custom_call.1} parent=5 // pred_region
        %s2065 = ssub.s32 %s13, 2
        // Predicated region
        $region45: #{tpu_custom_call.1} parent=43 // pred_check
          %p2066 = pneg %p160
        $region46: #{tpu_custom_call.1} parent=43 // pred_check_branch
          %2068 = sbr.rel (%p2066) target = $region48
        $region47: #{tpu_custom_call.1} parent=43 // pred_region
          %s2069 = sand.u32 %s145, 1
          %s2070 = scalar_lea.sflag [#allocation3], %s2069
          %s2071 = sand.u32 %s145, 1
          %s2072 = smul.addr %s2071, 128
          %s2073 = scalar_lea.vmem [#allocation2], %s2072
          %2074 = dma.done %s2070, 2048
        $region48: #{tpu_custom_call.1} parent=43 // pred_fallthru
          _
      $region44: #{tpu_custom_call.1} parent=5 // pred_fallthru
        _
    $region6: #{tpu_custom_call.1} parent=1 // loop_footer
      %s17 = sadd.s32 1, %s13
    $region7: #{tpu_custom_call.1} parent=1 // loop_footer_branch
      %12 = sbr.rel target = $region3
    $region8: #{tpu_custom_call.1} parent=1 // loop_exit
      _
    %2075 = vsyncpa [#allocation3], 1
    %s2076 = scalar_lea.sflag [#allocation3], 1
    %2077 = vsyncpa %s2076, 1

</llo_original>
